<compile_context>
chip_gen: v7x
topology: tpu7x:2x2x1
jax: 0.10.0
libtpu: 0.0.40
codegen_flags: <defaults>
</compile_context>

<pallas_src>
import functools
import math

import numpy as np
import jax
import jax.numpy as jnp
from jax.experimental import pallas as pl
from jax.experimental.pallas import tpu as pltpu


# ----------------------------------------------------------------------------- utils
def to_multiple(x, multiple):
    """Identical semantics to the PyTorch helper (works on floats too)."""
    if x % multiple == 0:
        return x
    return x + multiple - x % multiple


# ----------------------------------------------------------------------------- fused kernel
def _convcnp_kernel(x_ref, y_ref, tg_ref, xo_ref,
                    enc_sig_ref, enc_w_ref, enc_b_ref,
                    w1_ref, b1_ref, w2_ref, b2_ref,
                    mean_sig_ref, mean_w_ref, mean_b_ref,
                    sig_sig_ref, sig_w_ref, sig_b_ref,
                    mean_ref, sigma_ref,
                    col1_ref, col2_ref,
                    *, m, K, C_enc, C_hid, C_out):
    # Layout: channels on sublanes, grid positions on lanes.
    # tg_ref holds a halo-extended grid of width M0 = m + 4*pad; the real grid lives
    # at lane offsets [2*pad, 2*pad + m).  The halo lets both convs be expressed as
    # plain static slices while reproducing PyTorch Conv1d zero padding.
    pad = K // 2
    M1 = m + 2 * pad          # conv1 output width (carries halo for conv2)
    M0 = m + 4 * pad          # encoder output width (carries halo for conv1)

    x = x_ref[0]              # (n_ctx, 1)  context locations (column)
    yv = y_ref[0]             # (n_ctx, 1)  context values
    tg_ext = tg_ref[0]        # (1, M0)     extended grid (row)
    xo = xo_ref[0]            # (n_out, 1)  target locations (column)

    # ---------------- encoder: ConvDeepSet + sigmoid (pure VPU/EUP, no MXU) ----------------
    d_ctx = (x - tg_ext) ** 2                                           # (n_ctx, M0)
    f0 = 0.5 * jnp.exp(-2.0 * enc_sig_ref[0])                           # 0.5 / scale_0**2
    f1 = 0.5 * jnp.exp(-2.0 * enc_sig_ref[1])
    density = jnp.sum(jnp.exp(-d_ctx * f0), axis=0, keepdims=True)      # (1, M0)
    conv = jnp.sum(jnp.exp(-d_ctx * f1) * yv, axis=0, keepdims=True)    # (1, M0)
    norm = conv / (density + 1e-8)

    ew = enc_w_ref[...]                                                 # (C_enc, 2)
    h0 = ew[:, 0:1] * density + ew[:, 1:2] * norm + enc_b_ref[...]      # (C_enc, M0)
    h0 = 1.0 / (1.0 + jnp.exp(-h0))                                     # sigmoid

    # zero the halo so the convs see PyTorch-style zero padding
    lane0 = jax.lax.broadcasted_iota(jnp.int32, (C_enc, M0), 1)
    h0 = jnp.where((lane0 >= 2 * pad) & (lane0 < 2 * pad + m), h0, 0.0)

    # ---------------- rho conv1: im2col + single MXU matmul + ReLU ----------------
    for k in range(K):                                                  # static unroll
        col1_ref[pl.ds(k * C_enc, C_enc), :] = h0[:, k:k + M1]
    g = jnp.dot(w1_ref[...], col1_ref[...],
                preferred_element_type=jnp.float32) + b1_ref[...]       # (C_hid, M1)
    g = jnp.maximum(g, 0.0)
    lane1 = jax.lax.broadcasted_iota(jnp.int32, (C_hid, M1), 1)
    g = jnp.where((lane1 >= pad) & (lane1 < pad + m), g, 0.0)           # zero halo for conv2

    # ---------------- rho conv2: im2col + single MXU matmul ----------------
    for k in range(K):
        col2_ref[pl.ds(k * C_hid, C_hid), :] = g[:, k:k + m]
    h = jnp.dot(w2_ref[...], col2_ref[...],
                preferred_element_type=jnp.float32) + b2_ref[...]       # (C_out, m)

    # ---------------- mean / sigma FinalLayer heads, fused (VPU + one lane reduce each) ----------------
    tg = tg_ext[:, 2 * pad:2 * pad + m]                                 # (1, m) real grid
    d_out = (xo - tg) ** 2                                              # (n_out, m)
    n_out = d_out.shape[0]
    p_mean = jnp.zeros((n_out, m), jnp.float32)
    p_sig = jnp.zeros((n_out, m), jnp.float32)
    for c in range(C_out):                                              # static unroll, tiny C
        hc = h[c:c + 1, :]                                              # (1, m) sublane row
        fm = 0.5 * jnp.exp(-2.0 * mean_sig_ref[c])
        fs = 0.5 * jnp.exp(-2.0 * sig_sig_ref[c])
        p_mean = p_mean + jnp.exp(-d_out * fm) * (mean_w_ref[c] * hc)
        p_sig = p_sig + jnp.exp(-d_out * fs) * (sig_w_ref[c] * hc)

    mean_acc = jnp.sum(p_mean, axis=1, keepdims=True) + mean_b_ref[0]   # (n_out, 1)
    sig_acc = jnp.sum(p_sig, axis=1, keepdims=True) + sig_b_ref[0]
    # numerically stable softplus, matches nn.Softplus
    sig_acc = jnp.maximum(sig_acc, 0.0) + jnp.log(1.0 + jnp.exp(-jnp.abs(sig_acc)))
    mean_ref[0] = mean_acc
    sigma_ref[0] = sig_acc


def convcnp_forward(p, x, y, x_out, x_grid):
    B, n, _ = x.shape
    n_out = x_out.shape[1]
    m = x_grid.shape[1]
    C_enc = p["enc_w"].shape[1]
    K, _, C_hid = p["conv1_w"].shape
    C_out = p["conv2_w"].shape[2]
    pad = K // 2
    M0 = m + 4 * pad
    M1 = m + 2 * pad

    # Grid is identical across the batch; extend it by 2*pad on each side (halo values
    # are masked to zero inside the kernel, only their finiteness matters).
    tg_ext = jnp.pad(x_grid[0:1], ((0, 0), (2 * pad, 2 * pad), (0, 0)), mode="edge")
    tg_ext = jnp.swapaxes(tg_ext, 1, 2)                       # (1, 1, M0)

    # Pre-arrange tiny parameter tensors for the lane-dense / im2col layout.
    enc_wT = jnp.transpose(p["enc_w"])                        # (C_enc, 2)
    enc_b = p["enc_b"].reshape(C_enc, 1)
    w1 = jnp.transpose(p["conv1_w"], (2, 0, 1)).reshape(C_hid, K * C_enc)   # (Cout, K*Cin)
    b1 = p["conv1_b"].reshape(C_hid, 1)
    w2 = jnp.transpose(p["conv2_w"], (2, 0, 1)).reshape(C_out, K * C_hid)
    b2 = p["conv2_b"].reshape(C_out, 1)

    kern = functools.partial(_convcnp_kernel, m=m, K=K,
                             C_enc=C_enc, C_hid=C_hid, C_out=C_out)
    smem = pl.BlockSpec(memory_space=pltpu.MemorySpace.SMEM)

    mean, sigma = pl.pallas_call(
        kern,
        out_shape=(jax.ShapeDtypeStruct((B, n_out, 1), jnp.float32),
                   jax.ShapeDtypeStruct((B, n_out, 1), jnp.float32)),
        grid=(B,),
        in_specs=[
            pl.BlockSpec((1, n, 1), lambda i: (i, 0, 0)),          # x (context locations)
            pl.BlockSpec((1, n, 1), lambda i: (i, 0, 0)),          # y (context values)
            pl.BlockSpec((1, 1, M0), lambda i: (0, 0, 0)),         # extended grid row
            pl.BlockSpec((1, n_out, 1), lambda i: (i, 0, 0)),      # x_out (targets)
            smem,                                                  # enc_sigma (2,)
            pl.BlockSpec((C_enc, 2), lambda i: (0, 0)),            # enc W^T
            pl.BlockSpec((C_enc, 1), lambda i: (0, 0)),            # enc b
            pl.BlockSpec((C_hid, K * C_enc), lambda i: (0, 0)),    # conv1 W (im2col form)
            pl.BlockSpec((C_hid, 1), lambda i: (0, 0)),            # conv1 b
            pl.BlockSpec((C_out, K * C_hid), lambda i: (0, 0)),    # conv2 W (im2col form)
            pl.BlockSpec((C_out, 1), lambda i: (0, 0)),            # conv2 b
            smem, smem, smem,                                      # mean head: sigma, w, b
            smem, smem, smem,                                      # sigma head: sigma, w, b
        ],
        out_specs=(pl.BlockSpec((1, n_out, 1), lambda i: (i, 0, 0)),
                   pl.BlockSpec((1, n_out, 1), lambda i: (i, 0, 0))),
        scratch_shapes=[
            pltpu.VMEM((K * C_enc, M1), jnp.float32),              # im2col buffer conv1
            pltpu.VMEM((K * C_hid, m), jnp.float32),               # im2col buffer conv2
        ],
        compiler_params=pltpu.CompilerParams(dimension_semantics=("parallel",)),
    )(x, y, tg_ext, x_out,
      p["enc_sigma"], enc_wT, enc_b, w1, b1, w2, b2,
      p["mean_sigma"], p["mean_w"], p["mean_b"],
      p["sigma_sigma"], p["sigma_w"], p["sigma_b"])
    return mean, sigma


# ----------------------------------------------------------------------------- grid construction
def build_grid(x, x_out, points_per_unit, multiplier):
    # Host-side, exactly mirroring the PyTorch code (data-dependent shape).
    # TODO(synk): the x_min/x_max -> num_points computation determines array shapes,
    # so it cannot live inside a Pallas kernel; it stays host-side as in PyTorch.
    x_min = min(float(jnp.min(x)), float(jnp.min(x_out)), -2.0) - 0.1
    x_max = max(float(jnp.max(x)), float(jnp.max(x_out)), 2.0) + 0.1
    num_points = int(to_multiple(points_per_unit * (x_max - x_min), multiplier))
    B = x.shape[0]
    grid = jnp.linspace(x_min, x_max, num_points, dtype=jnp.float32)
    return jnp.broadcast_to(grid[None, :, None], (B, num_points, 1))


# ----------------------------------------------------------------------------- pure-JAX reference
def reference_forward(p, x, y, x_out, x_grid, K=5):
    hp = jax.lax.Precision.HIGHEST
    B, n, _ = x.shape

    # ConvDeepSet encoder + sigmoid
    d = (x - jnp.swapaxes(x_grid, 1, 2)) ** 2                         # (B, n, m)
    sc = jnp.exp(p["enc_sigma"])
    wt = jnp.exp(-0.5 * d[..., None] / sc[None, None, None, :] ** 2)  # (B, n, m, 2)
    ycat = jnp.concatenate([jnp.ones((B, n, 1), jnp.float32), y], axis=2)
    yo = (ycat[:, :, None, :] * wt).sum(axis=1)                       # (B, m, 2)
    dens, conv = yo[..., :1], yo[..., 1:]
    rep = jnp.concatenate([dens, conv / (dens + 1e-8)], axis=-1)
    h = jnp.einsum("bmi,ic->bmc", rep, p["enc_w"], precision=hp) + p["enc_b"]
    h = jax.nn.sigmoid(h)

    # rho: conv1d in NLC layout
    def conv1d(xin, W, bvec, relu):
        L = xin.shape[1]
        xp = jnp.pad(xin, ((0, 0), (K // 2, K // 2), (0, 0)))
        acc = jnp.zeros((B, L, W.shape[2]), jnp.float32) + bvec
        for k in range(K):
            acc = acc + jnp.einsum("blc,co->blo", xp[:, k:k + L, :], W[k], precision=hp)
        return jnp.maximum(acc, 0.0) if relu else acc

    h = conv1d(h, p["conv1_w"], p["conv1_b"], True)
    h = conv1d(h, p["conv2_w"], p["conv2_b"], False)

    # FinalLayer heads
    def final(sig, w, b, apply_sp):
        d2 = (x_grid - jnp.swapaxes(x_out, 1, 2)) ** 2                          # (B, m, n_out)
        sc2 = jnp.exp(sig)
        wt2 = jnp.exp(-0.5 * d2[..., None] / sc2[None, None, None, :] ** 2)     # (B, m, n_out, C)
        yo2 = (h[:, :, None, :] * wt2).sum(axis=1)                              # (B, n_out, C)
        out = jnp.einsum("bnc,c->bn", yo2, w, precision=hp)[..., None] + b
        return jax.nn.softplus(out) if apply_sp else out

    mean = final(p["mean_sigma"], p["mean_w"], p["mean_b"], False)
    sigma = final(p["sigma_sigma"], p["sigma_w"], p["sigma_b"], True)
    return mean, sigma


# ----------------------------------------------------------------------------- params
def init_params(key, *, ppu, c_rho_in=8, c_hidden=16, c_rho_out=8, K=5):
    log_ls = math.log(2.0 / ppu)  # init_length_scale = 2 / points_per_unit
    ks = jax.random.split(key, 5)

    def xavier(k, shape, fan_in, fan_out):
        std = math.sqrt(2.0 / (fan_in + fan_out))
        return (std * jax.random.normal(k, shape)).astype(jnp.float32)

    return {
        # ConvDeepSet encoder: Linear(2 -> c_rho_in), sigma param of size 2
        "enc_sigma": jnp.full((2,), log_ls, jnp.float32),
        "enc_w": xavier(ks[0], (2, c_rho_in), 2, c_rho_in),
        "enc_b": jnp.zeros((c_rho_in,), jnp.float32),
        # rho (SimpleConv-style): Conv1d(c_rho_in->16, k=5) -> ReLU -> Conv1d(16->c_rho_out, k=5)
        "conv1_w": xavier(ks[1], (K, c_rho_in, c_hidden), K * c_rho_in, c_hidden),
        "conv1_b": jnp.full((c_hidden,), 0.01, jnp.float32),
        "conv2_w": xavier(ks[2], (K, c_hidden, c_rho_out), K * c_hidden, c_rho_out),
        "conv2_b": jnp.full((c_rho_out,), 0.01, jnp.float32),
        # FinalLayer heads: Linear(c_rho_out -> 1), sigma param of size c_rho_out
        "mean_sigma": jnp.full((c_rho_out,), log_ls, jnp.float32),
        "mean_w": xavier(ks[3], (c_rho_out,), c_rho_out, 1),
        "mean_b": jnp.zeros((1,), jnp.float32),
        "sigma_sigma": jnp.full((c_rho_out,), log_ls, jnp.float32),
        "sigma_w": xavier(ks[4], (c_rho_out,), c_rho_out, 1),
        "sigma_b": jnp.zeros((1,), jnp.float32),
    }


# ----------------------------------------------------------------------------- main
if __name__ == "__main__":
    key = jax.random.PRNGKey(0)
    kx, ky, kt, kp = jax.random.split(key, 4)

    B, n_ctx, n_out = 2, 8, 10
    points_per_unit = 16
    multiplier = 2 ** 0  # rho.num_halving_layers = 0 (SimpleConv-style)

    x = jax.random.uniform(kx, (B, n_ctx, 1), jnp.float32, -2.0, 2.0)
    y = jnp.sin(2.0 * x) + 0.1 * jax.random.normal(ky, (B, n_ctx, 1), dtype=jnp.float32)
    x_out = jax.random.uniform(kt, (B, n_out, 1), jnp.float32, -2.0, 2.0)

    params = init_params(kp, ppu=points_per_unit)
    x_grid = build_grid(x, x_out, points_per_unit, multiplier)

    mean, sigma = convcnp_forward(params, x, y, x_out, x_grid)
    mean, sigma = jax.block_until_ready((mean, sigma))

    mean_ref, sigma_ref = reference_forward(params, x, y, x_out, x_grid)
    err_m = float(jnp.max(jnp.abs(mean - mean_ref)))
    err_s = float(jnp.max(jnp.abs(sigma - sigma_ref)))

    assert mean.shape == (B, n_out, 1) and sigma.shape == (B, n_out, 1)
    assert np.all(np.isfinite(np.asarray(mean))) and np.all(np.isfinite(np.asarray(sigma)))
    assert err_m < 1e-3 and err_s < 1e-3, (err_m, err_s)

    print("KERNEL_OK")
</pallas_src>

<mosaic_0001>
module attributes {stable_mosaic.version = 11 : i64} {
  func.func @_convcnp_kernel(%arg0: i32, %arg1: memref<1x8x1xf32, #tpu.memory_space<vmem>>, %arg2: memref<1x8x1xf32, #tpu.memory_space<vmem>>, %arg3: memref<1x1x76xf32, #tpu.memory_space<vmem>>, %arg4: memref<1x10x1xf32, #tpu.memory_space<vmem>>, %arg5: memref<2xf32, #tpu.memory_space<smem>>, %arg6: memref<8x2xf32, #tpu.memory_space<vmem>>, %arg7: memref<8x1xf32, #tpu.memory_space<vmem>>, %arg8: memref<16x40xf32, #tpu.memory_space<vmem>>, %arg9: memref<16x1xf32, #tpu.memory_space<vmem>>, %arg10: memref<8x80xf32, #tpu.memory_space<vmem>>, %arg11: memref<8x1xf32, #tpu.memory_space<vmem>>, %arg12: memref<8xf32, #tpu.memory_space<smem>>, %arg13: memref<8xf32, #tpu.memory_space<smem>>, %arg14: memref<1xf32, #tpu.memory_space<smem>>, %arg15: memref<8xf32, #tpu.memory_space<smem>>, %arg16: memref<8xf32, #tpu.memory_space<smem>>, %arg17: memref<1xf32, #tpu.memory_space<smem>>, %arg18: memref<1x10x1xf32, #tpu.memory_space<vmem>>, %arg19: memref<1x10x1xf32, #tpu.memory_space<vmem>>, %arg20: memref<40x72xf32, #tpu.memory_space<vmem>>, %arg21: memref<80x68xf32, #tpu.memory_space<vmem>>) attributes {dimension_semantics = [#tpu.dimension_semantics<parallel>], iteration_bounds = array<i64: 2>, scalar_prefetch = 0 : i64, scratch_operands = 2 : i64, tpu.core_type = #tpu.core_type<tc>, window_params = [{transform_indices = @transform_0, window_bounds = array<i64: 1, 8, 1>}, {transform_indices = @transform_1, window_bounds = array<i64: 1, 8, 1>}, {pipeline_mode = #tpu.pipeline_mode<synchronous>, transform_indices = @transform_2, window_bounds = array<i64: 1, 1, 76>}, {transform_indices = @transform_3, window_bounds = array<i64: 1, 10, 1>}, {transform_indices = @transform_4, window_bounds = array<i64: 2>}, {pipeline_mode = #tpu.pipeline_mode<synchronous>, transform_indices = @transform_5, window_bounds = array<i64: 8, 2>}, {pipeline_mode = #tpu.pipeline_mode<synchronous>, transform_indices = @transform_6, window_bounds = array<i64: 8, 1>}, {pipeline_mode = #tpu.pipeline_mode<synchronous>, transform_indices = @transform_7, window_bounds = array<i64: 16, 40>}, {pipeline_mode = #tpu.pipeline_mode<synchronous>, transform_indices = @transform_8, window_bounds = array<i64: 16, 1>}, {pipeline_mode = #tpu.pipeline_mode<synchronous>, transform_indices = @transform_9, window_bounds = array<i64: 8, 80>}, {pipeline_mode = #tpu.pipeline_mode<synchronous>, transform_indices = @transform_10, window_bounds = array<i64: 8, 1>}, {transform_indices = @transform_11, window_bounds = array<i64: 8>}, {transform_indices = @transform_12, window_bounds = array<i64: 8>}, {transform_indices = @transform_13, window_bounds = array<i64: 1>}, {transform_indices = @transform_14, window_bounds = array<i64: 8>}, {transform_indices = @transform_15, window_bounds = array<i64: 8>}, {transform_indices = @transform_16, window_bounds = array<i64: 1>}, {transform_indices = @transform_17, window_bounds = array<i64: 1, 10, 1>}, {transform_indices = @transform_18, window_bounds = array<i64: 1, 10, 1>}]} {
    %c0 = arith.constant 0 : index
    %c0_0 = arith.constant 0 : index
    %c0_1 = arith.constant 0 : index
    %0 = vector.load %arg1[%c0, %c0_0, %c0_1] : memref<1x8x1xf32, #tpu.memory_space<vmem>>, vector<1x8x1xf32>
    %1 = vector.shape_cast %0 : vector<1x8x1xf32> to vector<8x1xf32>
    %c0_2 = arith.constant 0 : index
    %c0_3 = arith.constant 0 : index
    %c0_4 = arith.constant 0 : index
    %2 = vector.load %arg2[%c0_2, %c0_3, %c0_4] : memref<1x8x1xf32, #tpu.memory_space<vmem>>, vector<1x8x1xf32>
    %3 = vector.shape_cast %2 : vector<1x8x1xf32> to vector<8x1xf32>
    %c0_5 = arith.constant 0 : index
    %c0_6 = arith.constant 0 : index
    %c0_7 = arith.constant 0 : index
    %4 = vector.load %arg3[%c0_5, %c0_6, %c0_7] : memref<1x1x76xf32, #tpu.memory_space<vmem>>, vector<1x1x76xf32>
    %5 = vector.shape_cast %4 : vector<1x1x76xf32> to vector<1x76xf32>
    %c0_8 = arith.constant 0 : index
    %c0_9 = arith.constant 0 : index
    %c0_10 = arith.constant 0 : index
    %6 = vector.load %arg4[%c0_8, %c0_9, %c0_10] : memref<1x10x1xf32, #tpu.memory_space<vmem>>, vector<1x10x1xf32>
    %7 = vector.shape_cast %6 : vector<1x10x1xf32> to vector<10x1xf32>
    %8 = vector.broadcast %1 : vector<8x1xf32> to vector<8x76xf32>
    %9 = vector.broadcast %5 : vector<1x76xf32> to vector<8x76xf32>
    %10 = arith.subf %8, %9 : vector<8x76xf32>
    %11 = arith.mulf %10, %10 : vector<8x76xf32>
    %c0_11 = arith.constant 0 : index
    %12 = memref.load %arg5[%c0_11] : memref<2xf32, #tpu.memory_space<smem>>
    %cst = arith.constant -2.000000e+00 : f32
    %13 = arith.mulf %cst, %12 : f32
    %14 = math.exp %13 : f32
    %cst_12 = arith.constant 5.000000e-01 : f32
    %15 = arith.mulf %cst_12, %14 : f32
    %c1 = arith.constant 1 : index
    %16 = memref.load %arg5[%c1] : memref<2xf32, #tpu.memory_space<smem>>
    %cst_13 = arith.constant -2.000000e+00 : f32
    %17 = arith.mulf %cst_13, %16 : f32
    %18 = math.exp %17 : f32
    %cst_14 = arith.constant 5.000000e-01 : f32
    %19 = arith.mulf %cst_14, %18 : f32
    %cst_15 = arith.constant 0.000000e+00 : f32
    %20 = vector.broadcast %cst_15 : f32 to vector<8x76xf32>
    %21 = arith.subf %20, %11 : vector<8x76xf32>
    %22 = vector.broadcast %15 : f32 to vector<8x76xf32>
    %23 = arith.mulf %21, %22 : vector<8x76xf32>
    %24 = math.exp %23 : vector<8x76xf32>
    %cst_16 = arith.constant dense<0.000000e+00> : vector<76xf32>
    %25 = vector.multi_reduction <add>, %24, %cst_16 [0] : vector<8x76xf32> to vector<76xf32>
    %26 = vector.shape_cast %25 : vector<76xf32> to vector<1x76xf32>
    %cst_17 = arith.constant 0.000000e+00 : f32
    %27 = vector.broadcast %cst_17 : f32 to vector<8x76xf32>
    %28 = arith.subf %27, %11 : vector<8x76xf32>
    %29 = vector.broadcast %19 : f32 to vector<8x76xf32>
    %30 = arith.mulf %28, %29 : vector<8x76xf32>
    %31 = math.exp %30 : vector<8x76xf32>
    %32 = vector.broadcast %3 : vector<8x1xf32> to vector<8x76xf32>
    %33 = arith.mulf %31, %32 : vector<8x76xf32>
    %cst_18 = arith.constant dense<0.000000e+00> : vector<76xf32>
    %34 = vector.multi_reduction <add>, %33, %cst_18 [0] : vector<8x76xf32> to vector<76xf32>
    %35 = vector.shape_cast %34 : vector<76xf32> to vector<1x76xf32>
    %cst_19 = arith.constant 9.99999993E-9 : f32
    %36 = vector.broadcast %cst_19 : f32 to vector<1x76xf32>
    %37 = arith.addf %26, %36 : vector<1x76xf32>
    %38 = arith.divf %35, %37 : vector<1x76xf32>
    %c0_20 = arith.constant 0 : index
    %c0_21 = arith.constant 0 : index
    %39 = vector.load %arg6[%c0_20, %c0_21] : memref<8x2xf32, #tpu.memory_space<vmem>>, vector<8x2xf32>
    %40 = vector.extract_strided_slice %39 {offsets = [0, 0], sizes = [8, 1], strides = [1, 1]} : vector<8x2xf32> to vector<8x1xf32>
    %41 = vector.broadcast %40 : vector<8x1xf32> to vector<8x76xf32>
    %42 = vector.broadcast %26 : vector<1x76xf32> to vector<8x76xf32>
    %43 = arith.mulf %41, %42 : vector<8x76xf32>
    %44 = vector.extract_strided_slice %39 {offsets = [0, 1], sizes = [8, 1], strides = [1, 1]} : vector<8x2xf32> to vector<8x1xf32>
    %45 = vector.broadcast %44 : vector<8x1xf32> to vector<8x76xf32>
    %46 = vector.broadcast %38 : vector<1x76xf32> to vector<8x76xf32>
    %47 = arith.mulf %45, %46 : vector<8x76xf32>
    %48 = arith.addf %43, %47 : vector<8x76xf32>
    %c0_22 = arith.constant 0 : index
    %c0_23 = arith.constant 0 : index
    %49 = vector.load %arg7[%c0_22, %c0_23] : memref<8x1xf32, #tpu.memory_space<vmem>>, vector<8x1xf32>
    %50 = vector.broadcast %49 : vector<8x1xf32> to vector<8x76xf32>
    %51 = arith.addf %48, %50 : vector<8x76xf32>
    %cst_24 = arith.constant 0.000000e+00 : f32
    %52 = vector.broadcast %cst_24 : f32 to vector<8x76xf32>
    %53 = arith.subf %52, %51 : vector<8x76xf32>
    %54 = math.exp %53 : vector<8x76xf32>
    %cst_25 = arith.constant 1.000000e+00 : f32
    %55 = vector.broadcast %cst_25 : f32 to vector<8x76xf32>
    %56 = arith.addf %55, %54 : vector<8x76xf32>
    %cst_26 = arith.constant 1.000000e+00 : f32
    %57 = vector.broadcast %cst_26 : f32 to vector<8x76xf32>
    %58 = arith.divf %57, %56 : vector<8x76xf32>
    %59 = tpu.iota {dimensions = array<i32: 1>} : vector<8x76xi32>
    %c4_i32 = arith.constant 4 : i32
    %60 = vector.broadcast %c4_i32 : i32 to vector<8x76xi32>
    %61 = arith.cmpi sge, %59, %60 : vector<8x76xi32>
    %c72_i32 = arith.constant 72 : i32
    %62 = vector.broadcast %c72_i32 : i32 to vector<8x76xi32>
    %63 = arith.cmpi slt, %59, %62 : vector<8x76xi32>
    %64 = arith.andi %61, %63 : vector<8x76xi1>
    %cst_27 = arith.constant 0.000000e+00 : f32
    %65 = vector.broadcast %cst_27 : f32 to vector<8x76xf32>
    %66 = arith.select %64, %58, %65 : vector<8x76xi1>, vector<8x76xf32>
    %67 = vector.extract_strided_slice %66 {offsets = [0, 0], sizes = [8, 72], strides = [1, 1]} : vector<8x76xf32> to vector<8x72xf32>
    %c0_28 = arith.constant 0 : index
    %c0_29 = arith.constant 0 : index
    %68 = vector.load %arg20[%c0_28, %c0_29] : memref<40x72xf32, #tpu.memory_space<vmem>>, vector<8x72xf32>
    tpu.vector_store %arg20[%c0_28, %c0_29], %67 {strides = array<i32>} : memref<40x72xf32, #tpu.memory_space<vmem>>, vector<8x72xf32>,
    %69 = vector.extract_strided_slice %66 {offsets = [0, 1], sizes = [8, 72], strides = [1, 1]} : vector<8x76xf32> to vector<8x72xf32>
    %c8 = arith.constant 8 : index
    %c0_30 = arith.constant 0 : index
    %70 = vector.load %arg20[%c8, %c0_30] : memref<40x72xf32, #tpu.memory_space<vmem>>, vector<8x72xf32>
    tpu.vector_store %arg20[%c8, %c0_30], %69 {strides = array<i32>} : memref<40x72xf32, #tpu.memory_space<vmem>>, vector<8x72xf32>,
    %71 = vector.extract_strided_slice %66 {offsets = [0, 2], sizes = [8, 72], strides = [1, 1]} : vector<8x76xf32> to vector<8x72xf32>
    %c16 = arith.constant 16 : index
    %c0_31 = arith.constant 0 : index
    %72 = vector.load %arg20[%c16, %c0_31] : memref<40x72xf32, #tpu.memory_space<vmem>>, vector<8x72xf32>
    tpu.vector_store %arg20[%c16, %c0_31], %71 {strides = array<i32>} : memref<40x72xf32, #tpu.memory_space<vmem>>, vector<8x72xf32>,
    %73 = vector.extract_strided_slice %66 {offsets = [0, 3], sizes = [8, 72], strides = [1, 1]} : vector<8x76xf32> to vector<8x72xf32>
    %c24 = arith.constant 24 : index
    %c0_32 = arith.constant 0 : index
    %74 = vector.load %arg20[%c24, %c0_32] : memref<40x72xf32, #tpu.memory_space<vmem>>, vector<8x72xf32>
    tpu.vector_store %arg20[%c24, %c0_32], %73 {strides = array<i32>} : memref<40x72xf32, #tpu.memory_space<vmem>>, vector<8x72xf32>,
    %75 = vector.extract_strided_slice %66 {offsets = [0, 4], sizes = [8, 72], strides = [1, 1]} : vector<8x76xf32> to vector<8x72xf32>
    %c32 = arith.constant 32 : index
    %c0_33 = arith.constant 0 : index
    %76 = vector.load %arg20[%c32, %c0_33] : memref<40x72xf32, #tpu.memory_space<vmem>>, vector<8x72xf32>
    tpu.vector_store %arg20[%c32, %c0_33], %75 {strides = array<i32>} : memref<40x72xf32, #tpu.memory_space<vmem>>, vector<8x72xf32>,
    %c0_34 = arith.constant 0 : index
    %c0_35 = arith.constant 0 : index
    %77 = vector.load %arg8[%c0_34, %c0_35] : memref<16x40xf32, #tpu.memory_space<vmem>>, vector<16x40xf32>
    %c0_36 = arith.constant 0 : index
    %c0_37 = arith.constant 0 : index
    %78 = vector.load %arg20[%c0_36, %c0_37] : memref<40x72xf32, #tpu.memory_space<vmem>>, vector<40x72xf32>
    %cst_38 = arith.constant dense<0.000000e+00> : vector<16x72xf32>
    %79 = tpu.matmul %77, %78, %cst_38 {dimension_numbers = #tpu.dot_dimension_numbers<[1], [0], [0], [1], [0, 0, 1, 1], [], []>} : vector<16x40xf32>, vector<40x72xf32>, vector<16x72xf32> -> vector<16x72xf32>
    %c0_39 = arith.constant 0 : index
    %c0_40 = arith.constant 0 : index
    %80 = vector.load %arg9[%c0_39, %c0_40] : memref<16x1xf32, #tpu.memory_space<vmem>>, vector<16x1xf32>
    %81 = vector.broadcast %80 : vector<16x1xf32> to vector<16x72xf32>
    %82 = arith.addf %79, %81 : vector<16x72xf32>
    %cst_41 = arith.constant 0.000000e+00 : f32
    %83 = vector.broadcast %cst_41 : f32 to vector<16x72xf32>
    %84 = arith.maximumf %82, %83 : vector<16x72xf32>
    %85 = tpu.iota {dimensions = array<i32: 1>} : vector<16x72xi32>
    %c2_i32 = arith.constant 2 : i32
    %86 = vector.broadcast %c2_i32 : i32 to vector<16x72xi32>
    %87 = arith.cmpi sge, %85, %86 : vector<16x72xi32>
    %c70_i32 = arith.constant 70 : i32
    %88 = vector.broadcast %c70_i32 : i32 to vector<16x72xi32>
    %89 = arith.cmpi slt, %85, %88 : vector<16x72xi32>
    %90 = arith.andi %87, %89 : vector<16x72xi1>
    %cst_42 = arith.constant 0.000000e+00 : f32
    %91 = vector.broadcast %cst_42 : f32 to vector<16x72xf32>
    %92 = arith.select %90, %84, %91 : vector<16x72xi1>, vector<16x72xf32>
    %93 = vector.extract_strided_slice %92 {offsets = [0, 0], sizes = [16, 68], strides = [1, 1]} : vector<16x72xf32> to vector<16x68xf32>
    %c0_43 = arith.constant 0 : index
    %c0_44 = arith.constant 0 : index
    %94 = vector.load %arg21[%c0_43, %c0_44] : memref<80x68xf32, #tpu.memory_space<vmem>>, vector<16x68xf32>
    tpu.vector_store %arg21[%c0_43, %c0_44], %93 {strides = array<i32>} : memref<80x68xf32, #tpu.memory_space<vmem>>, vector<16x68xf32>,
    %95 = vector.extract_strided_slice %92 {offsets = [0, 1], sizes = [16, 68], strides = [1, 1]} : vector<16x72xf32> to vector<16x68xf32>
    %c16_45 = arith.constant 16 : index
    %c0_46 = arith.constant 0 : index
    %96 = vector.load %arg21[%c16_45, %c0_46] : memref<80x68xf32, #tpu.memory_space<vmem>>, vector<16x68xf32>
    tpu.vector_store %arg21[%c16_45, %c0_46], %95 {strides = array<i32>} : memref<80x68xf32, #tpu.memory_space<vmem>>, vector<16x68xf32>,
    %97 = vector.extract_strided_slice %92 {offsets = [0, 2], sizes = [16, 68], strides = [1, 1]} : vector<16x72xf32> to vector<16x68xf32>
    %c32_47 = arith.constant 32 : index
    %c0_48 = arith.constant 0 : index
    %98 = vector.load %arg21[%c32_47, %c0_48] : memref<80x68xf32, #tpu.memory_space<vmem>>, vector<16x68xf32>
    tpu.vector_store %arg21[%c32_47, %c0_48], %97 {strides = array<i32>} : memref<80x68xf32, #tpu.memory_space<vmem>>, vector<16x68xf32>,
    %99 = vector.extract_strided_slice %92 {offsets = [0, 3], sizes = [16, 68], strides = [1, 1]} : vector<16x72xf32> to vector<16x68xf32>
    %c48 = arith.constant 48 : index
    %c0_49 = arith.constant 0 : index
    %100 = vector.load %arg21[%c48, %c0_49] : memref<80x68xf32, #tpu.memory_space<vmem>>, vector<16x68xf32>
    tpu.vector_store %arg21[%c48, %c0_49], %99 {strides = array<i32>} : memref<80x68xf32, #tpu.memory_space<vmem>>, vector<16x68xf32>,
    %101 = vector.extract_strided_slice %92 {offsets = [0, 4], sizes = [16, 68], strides = [1, 1]} : vector<16x72xf32> to vector<16x68xf32>
    %c64 = arith.constant 64 : index
    %c0_50 = arith.constant 0 : index
    %102 = vector.load %arg21[%c64, %c0_50] : memref<80x68xf32, #tpu.memory_space<vmem>>, vector<16x68xf32>
    tpu.vector_store %arg21[%c64, %c0_50], %101 {strides = array<i32>} : memref<80x68xf32, #tpu.memory_space<vmem>>, vector<16x68xf32>,
    %c0_51 = arith.constant 0 : index
    %c0_52 = arith.constant 0 : index
    %103 = vector.load %arg10[%c0_51, %c0_52] : memref<8x80xf32, #tpu.memory_space<vmem>>, vector<8x80xf32>
    %c0_53 = arith.constant 0 : index
    %c0_54 = arith.constant 0 : index
    %104 = vector.load %arg21[%c0_53, %c0_54] : memref<80x68xf32, #tpu.memory_space<vmem>>, vector<80x68xf32>
    %cst_55 = arith.constant dense<0.000000e+00> : vector<8x68xf32>
    %105 = tpu.matmul %103, %104, %cst_55 {dimension_numbers = #tpu.dot_dimension_numbers<[1], [0], [0], [1], [0, 0, 1, 1], [], []>} : vector<8x80xf32>, vector<80x68xf32>, vector<8x68xf32> -> vector<8x68xf32>
    %c0_56 = arith.constant 0 : index
    %c0_57 = arith.constant 0 : index
    %106 = vector.load %arg11[%c0_56, %c0_57] : memref<8x1xf32, #tpu.memory_space<vmem>>, vector<8x1xf32>
    %107 = vector.broadcast %106 : vector<8x1xf32> to vector<8x68xf32>
    %108 = arith.addf %105, %107 : vector<8x68xf32>
    %109 = vector.extract_strided_slice %5 {offsets = [0, 4], sizes = [1, 68], strides = [1, 1]} : vector<1x76xf32> to vector<1x68xf32>
    %110 = vector.broadcast %7 : vector<10x1xf32> to vector<10x68xf32>
    %111 = vector.broadcast %109 : vector<1x68xf32> to vector<10x68xf32>
    %112 = arith.subf %110, %111 : vector<10x68xf32>
    %113 = arith.mulf %112, %112 : vector<10x68xf32>
    %cst_58 = arith.constant 0.000000e+00 : f32
    %114 = vector.broadcast %cst_58 : f32 to vector<10x68xf32>
    %cst_59 = arith.constant 0.000000e+00 : f32
    %115 = vector.broadcast %cst_59 : f32 to vector<10x68xf32>
    %116 = vector.extract_strided_slice %108 {offsets = [0, 0], sizes = [1, 68], strides = [1, 1]} : vector<8x68xf32> to vector<1x68xf32>
    %c0_60 = arith.constant 0 : index
    %117 = memref.load %arg12[%c0_60] : memref<8xf32, #tpu.memory_space<smem>>
    %cst_61 = arith.constant -2.000000e+00 : f32
    %118 = arith.mulf %cst_61, %117 : f32
    %119 = math.exp %118 : f32
    %cst_62 = arith.constant 5.000000e-01 : f32
    %120 = arith.mulf %cst_62, %119 : f32
    %c0_63 = arith.constant 0 : index
    %121 = memref.load %arg15[%c0_63] : memref<8xf32, #tpu.memory_space<smem>>
    %cst_64 = arith.constant -2.000000e+00 : f32
    %122 = arith.mulf %cst_64, %121 : f32
    %123 = math.exp %122 : f32
    %cst_65 = arith.constant 5.000000e-01 : f32
    %124 = arith.mulf %cst_65, %123 : f32
    %cst_66 = arith.constant 0.000000e+00 : f32
    %125 = vector.broadcast %cst_66 : f32 to vector<10x68xf32>
    %126 = arith.subf %125, %113 : vector<10x68xf32>
    %127 = vector.broadcast %120 : f32 to vector<10x68xf32>
    %128 = arith.mulf %126, %127 : vector<10x68xf32>
    %129 = math.exp %128 : vector<10x68xf32>
    %c0_67 = arith.constant 0 : index
    %130 = memref.load %arg13[%c0_67] : memref<8xf32, #tpu.memory_space<smem>>
    %131 = vector.broadcast %130 : f32 to vector<1x68xf32>
    %132 = arith.mulf %131, %116 : vector<1x68xf32>
    %133 = vector.broadcast %132 : vector<1x68xf32> to vector<10x68xf32>
    %134 = arith.mulf %129, %133 : vector<10x68xf32>
    %135 = arith.addf %114, %134 : vector<10x68xf32>
    %cst_68 = arith.constant 0.000000e+00 : f32
    %136 = vector.broadcast %cst_68 : f32 to vector<10x68xf32>
    %137 = arith.subf %136, %113 : vector<10x68xf32>
    %138 = vector.broadcast %124 : f32 to vector<10x68xf32>
    %139 = arith.mulf %137, %138 : vector<10x68xf32>
    %140 = math.exp %139 : vector<10x68xf32>
    %c0_69 = arith.constant 0 : index
    %141 = memref.load %arg16[%c0_69] : memref<8xf32, #tpu.memory_space<smem>>
    %142 = vector.broadcast %141 : f32 to vector<1x68xf32>
    %143 = arith.mulf %142, %116 : vector<1x68xf32>
    %144 = vector.broadcast %143 : vector<1x68xf32> to vector<10x68xf32>
    %145 = arith.mulf %140, %144 : vector<10x68xf32>
    %146 = arith.addf %115, %145 : vector<10x68xf32>
    %147 = vector.extract_strided_slice %108 {offsets = [1, 0], sizes = [1, 68], strides = [1, 1]} : vector<8x68xf32> to vector<1x68xf32>
    %c1_70 = arith.constant 1 : index
    %148 = memref.load %arg12[%c1_70] : memref<8xf32, #tpu.memory_space<smem>>
    %cst_71 = arith.constant -2.000000e+00 : f32
    %149 = arith.mulf %cst_71, %148 : f32
    %150 = math.exp %149 : f32
    %cst_72 = arith.constant 5.000000e-01 : f32
    %151 = arith.mulf %cst_72, %150 : f32
    %c1_73 = arith.constant 1 : index
    %152 = memref.load %arg15[%c1_73] : memref<8xf32, #tpu.memory_space<smem>>
    %cst_74 = arith.constant -2.000000e+00 : f32
    %153 = arith.mulf %cst_74, %152 : f32
    %154 = math.exp %153 : f32
    %cst_75 = arith.constant 5.000000e-01 : f32
    %155 = arith.mulf %cst_75, %154 : f32
    %cst_76 = arith.constant 0.000000e+00 : f32
    %156 = vector.broadcast %cst_76 : f32 to vector<10x68xf32>
    %157 = arith.subf %156, %113 : vector<10x68xf32>
    %158 = vector.broadcast %151 : f32 to vector<10x68xf32>
    %159 = arith.mulf %157, %158 : vector<10x68xf32>
    %160 = math.exp %159 : vector<10x68xf32>
    %c1_77 = arith.constant 1 : index
    %161 = memref.load %arg13[%c1_77] : memref<8xf32, #tpu.memory_space<smem>>
    %162 = vector.broadcast %161 : f32 to vector<1x68xf32>
    %163 = arith.mulf %162, %147 : vector<1x68xf32>
    %164 = vector.broadcast %163 : vector<1x68xf32> to vector<10x68xf32>
    %165 = arith.mulf %160, %164 : vector<10x68xf32>
    %166 = arith.addf %135, %165 : vector<10x68xf32>
    %cst_78 = arith.constant 0.000000e+00 : f32
    %167 = vector.broadcast %cst_78 : f32 to vector<10x68xf32>
    %168 = arith.subf %167, %113 : vector<10x68xf32>
    %169 = vector.broadcast %155 : f32 to vector<10x68xf32>
    %170 = arith.mulf %168, %169 : vector<10x68xf32>
    %171 = math.exp %170 : vector<10x68xf32>
    %c1_79 = arith.constant 1 : index
    %172 = memref.load %arg16[%c1_79] : memref<8xf32, #tpu.memory_space<smem>>
    %173 = vector.broadcast %172 : f32 to vector<1x68xf32>
    %174 = arith.mulf %173, %147 : vector<1x68xf32>
    %175 = vector.broadcast %174 : vector<1x68xf32> to vector<10x68xf32>
    %176 = arith.mulf %171, %175 : vector<10x68xf32>
    %177 = arith.addf %146, %176 : vector<10x68xf32>
    %178 = vector.extract_strided_slice %108 {offsets = [2, 0], sizes = [1, 68], strides = [1, 1]} : vector<8x68xf32> to vector<1x68xf32>
    %c2 = arith.constant 2 : index
    %179 = memref.load %arg12[%c2] : memref<8xf32, #tpu.memory_space<smem>>
    %cst_80 = arith.constant -2.000000e+00 : f32
    %180 = arith.mulf %cst_80, %179 : f32
    %181 = math.exp %180 : f32
    %cst_81 = arith.constant 5.000000e-01 : f32
    %182 = arith.mulf %cst_81, %181 : f32
    %c2_82 = arith.constant 2 : index
    %183 = memref.load %arg15[%c2_82] : memref<8xf32, #tpu.memory_space<smem>>
    %cst_83 = arith.constant -2.000000e+00 : f32
    %184 = arith.mulf %cst_83, %183 : f32
    %185 = math.exp %184 : f32
    %cst_84 = arith.constant 5.000000e-01 : f32
    %186 = arith.mulf %cst_84, %185 : f32
    %cst_85 = arith.constant 0.000000e+00 : f32
    %187 = vector.broadcast %cst_85 : f32 to vector<10x68xf32>
    %188 = arith.subf %187, %113 : vector<10x68xf32>
    %189 = vector.broadcast %182 : f32 to vector<10x68xf32>
    %190 = arith.mulf %188, %189 : vector<10x68xf32>
    %191 = math.exp %190 : vector<10x68xf32>
    %c2_86 = arith.constant 2 : index
    %192 = memref.load %arg13[%c2_86] : memref<8xf32, #tpu.memory_space<smem>>
    %193 = vector.broadcast %192 : f32 to vector<1x68xf32>
    %194 = arith.mulf %193, %178 : vector<1x68xf32>
    %195 = vector.broadcast %194 : vector<1x68xf32> to vector<10x68xf32>
    %196 = arith.mulf %191, %195 : vector<10x68xf32>
    %197 = arith.addf %166, %196 : vector<10x68xf32>
    %cst_87 = arith.constant 0.000000e+00 : f32
    %198 = vector.broadcast %cst_87 : f32 to vector<10x68xf32>
    %199 = arith.subf %198, %113 : vector<10x68xf32>
    %200 = vector.broadcast %186 : f32 to vector<10x68xf32>
    %201 = arith.mulf %199, %200 : vector<10x68xf32>
    %202 = math.exp %201 : vector<10x68xf32>
    %c2_88 = arith.constant 2 : index
    %203 = memref.load %arg16[%c2_88] : memref<8xf32, #tpu.memory_space<smem>>
    %204 = vector.broadcast %203 : f32 to vector<1x68xf32>
    %205 = arith.mulf %204, %178 : vector<1x68xf32>
    %206 = vector.broadcast %205 : vector<1x68xf32> to vector<10x68xf32>
    %207 = arith.mulf %202, %206 : vector<10x68xf32>
    %208 = arith.addf %177, %207 : vector<10x68xf32>
    %209 = vector.extract_strided_slice %108 {offsets = [3, 0], sizes = [1, 68], strides = [1, 1]} : vector<8x68xf32> to vector<1x68xf32>
    %c3 = arith.constant 3 : index
    %210 = memref.load %arg12[%c3] : memref<8xf32, #tpu.memory_space<smem>>
    %cst_89 = arith.constant -2.000000e+00 : f32
    %211 = arith.mulf %cst_89, %210 : f32
    %212 = math.exp %211 : f32
    %cst_90 = arith.constant 5.000000e-01 : f32
    %213 = arith.mulf %cst_90, %212 : f32
    %c3_91 = arith.constant 3 : index
    %214 = memref.load %arg15[%c3_91] : memref<8xf32, #tpu.memory_space<smem>>
    %cst_92 = arith.constant -2.000000e+00 : f32
    %215 = arith.mulf %cst_92, %214 : f32
    %216 = math.exp %215 : f32
    %cst_93 = arith.constant 5.000000e-01 : f32
    %217 = arith.mulf %cst_93, %216 : f32
    %cst_94 = arith.constant 0.000000e+00 : f32
    %218 = vector.broadcast %cst_94 : f32 to vector<10x68xf32>
    %219 = arith.subf %218, %113 : vector<10x68xf32>
    %220 = vector.broadcast %213 : f32 to vector<10x68xf32>
    %221 = arith.mulf %219, %220 : vector<10x68xf32>
    %222 = math.exp %221 : vector<10x68xf32>
    %c3_95 = arith.constant 3 : index
    %223 = memref.load %arg13[%c3_95] : memref<8xf32, #tpu.memory_space<smem>>
    %224 = vector.broadcast %223 : f32 to vector<1x68xf32>
    %225 = arith.mulf %224, %209 : vector<1x68xf32>
    %226 = vector.broadcast %225 : vector<1x68xf32> to vector<10x68xf32>
    %227 = arith.mulf %222, %226 : vector<10x68xf32>
    %228 = arith.addf %197, %227 : vector<10x68xf32>
    %cst_96 = arith.constant 0.000000e+00 : f32
    %229 = vector.broadcast %cst_96 : f32 to vector<10x68xf32>
    %230 = arith.subf %229, %113 : vector<10x68xf32>
    %231 = vector.broadcast %217 : f32 to vector<10x68xf32>
    %232 = arith.mulf %230, %231 : vector<10x68xf32>
    %233 = math.exp %232 : vector<10x68xf32>
    %c3_97 = arith.constant 3 : index
    %234 = memref.load %arg16[%c3_97] : memref<8xf32, #tpu.memory_space<smem>>
    %235 = vector.broadcast %234 : f32 to vector<1x68xf32>
    %236 = arith.mulf %235, %209 : vector<1x68xf32>
    %237 = vector.broadcast %236 : vector<1x68xf32> to vector<10x68xf32>
    %238 = arith.mulf %233, %237 : vector<10x68xf32>
    %239 = arith.addf %208, %238 : vector<10x68xf32>
    %240 = vector.extract_strided_slice %108 {offsets = [4, 0], sizes = [1, 68], strides = [1, 1]} : vector<8x68xf32> to vector<1x68xf32>
    %c4 = arith.constant 4 : index
    %241 = memref.load %arg12[%c4] : memref<8xf32, #tpu.memory_space<smem>>
    %cst_98 = arith.constant -2.000000e+00 : f32
    %242 = arith.mulf %cst_98, %241 : f32
    %243 = math.exp %242 : f32
    %cst_99 = arith.constant 5.000000e-01 : f32
    %244 = arith.mulf %cst_99, %243 : f32
    %c4_100 = arith.constant 4 : index
    %245 = memref.load %arg15[%c4_100] : memref<8xf32, #tpu.memory_space<smem>>
    %cst_101 = arith.constant -2.000000e+00 : f32
    %246 = arith.mulf %cst_101, %245 : f32
    %247 = math.exp %246 : f32
    %cst_102 = arith.constant 5.000000e-01 : f32
    %248 = arith.mulf %cst_102, %247 : f32
    %cst_103 = arith.constant 0.000000e+00 : f32
    %249 = vector.broadcast %cst_103 : f32 to vector<10x68xf32>
    %250 = arith.subf %249, %113 : vector<10x68xf32>
    %251 = vector.broadcast %244 : f32 to vector<10x68xf32>
    %252 = arith.mulf %250, %251 : vector<10x68xf32>
    %253 = math.exp %252 : vector<10x68xf32>
    %c4_104 = arith.constant 4 : index
    %254 = memref.load %arg13[%c4_104] : memref<8xf32, #tpu.memory_space<smem>>
    %255 = vector.broadcast %254 : f32 to vector<1x68xf32>
    %256 = arith.mulf %255, %240 : vector<1x68xf32>
    %257 = vector.broadcast %256 : vector<1x68xf32> to vector<10x68xf32>
    %258 = arith.mulf %253, %257 : vector<10x68xf32>
    %259 = arith.addf %228, %258 : vector<10x68xf32>
    %cst_105 = arith.constant 0.000000e+00 : f32
    %260 = vector.broadcast %cst_105 : f32 to vector<10x68xf32>
    %261 = arith.subf %260, %113 : vector<10x68xf32>
    %262 = vector.broadcast %248 : f32 to vector<10x68xf32>
    %263 = arith.mulf %261, %262 : vector<10x68xf32>
    %264 = math.exp %263 : vector<10x68xf32>
    %c4_106 = arith.constant 4 : index
    %265 = memref.load %arg16[%c4_106] : memref<8xf32, #tpu.memory_space<smem>>
    %266 = vector.broadcast %265 : f32 to vector<1x68xf32>
    %267 = arith.mulf %266, %240 : vector<1x68xf32>
    %268 = vector.broadcast %267 : vector<1x68xf32> to vector<10x68xf32>
    %269 = arith.mulf %264, %268 : vector<10x68xf32>
    %270 = arith.addf %239, %269 : vector<10x68xf32>
    %271 = vector.extract_strided_slice %108 {offsets = [5, 0], sizes = [1, 68], strides = [1, 1]} : vector<8x68xf32> to vector<1x68xf32>
    %c5 = arith.constant 5 : index
    %272 = memref.load %arg12[%c5] : memref<8xf32, #tpu.memory_space<smem>>
    %cst_107 = arith.constant -2.000000e+00 : f32
    %273 = arith.mulf %cst_107, %272 : f32
    %274 = math.exp %273 : f32
    %cst_108 = arith.constant 5.000000e-01 : f32
    %275 = arith.mulf %cst_108, %274 : f32
    %c5_109 = arith.constant 5 : index
    %276 = memref.load %arg15[%c5_109] : memref<8xf32, #tpu.memory_space<smem>>
    %cst_110 = arith.constant -2.000000e+00 : f32
    %277 = arith.mulf %cst_110, %276 : f32
    %278 = math.exp %277 : f32
    %cst_111 = arith.constant 5.000000e-01 : f32
    %279 = arith.mulf %cst_111, %278 : f32
    %cst_112 = arith.constant 0.000000e+00 : f32
    %280 = vector.broadcast %cst_112 : f32 to vector<10x68xf32>
    %281 = arith.subf %280, %113 : vector<10x68xf32>
    %282 = vector.broadcast %275 : f32 to vector<10x68xf32>
    %283 = arith.mulf %281, %282 : vector<10x68xf32>
    %284 = math.exp %283 : vector<10x68xf32>
    %c5_113 = arith.constant 5 : index
    %285 = memref.load %arg13[%c5_113] : memref<8xf32, #tpu.memory_space<smem>>
    %286 = vector.broadcast %285 : f32 to vector<1x68xf32>
    %287 = arith.mulf %286, %271 : vector<1x68xf32>
    %288 = vector.broadcast %287 : vector<1x68xf32> to vector<10x68xf32>
    %289 = arith.mulf %284, %288 : vector<10x68xf32>
    %290 = arith.addf %259, %289 : vector<10x68xf32>
    %cst_114 = arith.constant 0.000000e+00 : f32
    %291 = vector.broadcast %cst_114 : f32 to vector<10x68xf32>
    %292 = arith.subf %291, %113 : vector<10x68xf32>
    %293 = vector.broadcast %279 : f32 to vector<10x68xf32>
    %294 = arith.mulf %292, %293 : vector<10x68xf32>
    %295 = math.exp %294 : vector<10x68xf32>
    %c5_115 = arith.constant 5 : index
    %296 = memref.load %arg16[%c5_115] : memref<8xf32, #tpu.memory_space<smem>>
    %297 = vector.broadcast %296 : f32 to vector<1x68xf32>
    %298 = arith.mulf %297, %271 : vector<1x68xf32>
    %299 = vector.broadcast %298 : vector<1x68xf32> to vector<10x68xf32>
    %300 = arith.mulf %295, %299 : vector<10x68xf32>
    %301 = arith.addf %270, %300 : vector<10x68xf32>
    %302 = vector.extract_strided_slice %108 {offsets = [6, 0], sizes = [1, 68], strides = [1, 1]} : vector<8x68xf32> to vector<1x68xf32>
    %c6 = arith.constant 6 : index
    %303 = memref.load %arg12[%c6] : memref<8xf32, #tpu.memory_space<smem>>
    %cst_116 = arith.constant -2.000000e+00 : f32
    %304 = arith.mulf %cst_116, %303 : f32
    %305 = math.exp %304 : f32
    %cst_117 = arith.constant 5.000000e-01 : f32
    %306 = arith.mulf %cst_117, %305 : f32
    %c6_118 = arith.constant 6 : index
    %307 = memref.load %arg15[%c6_118] : memref<8xf32, #tpu.memory_space<smem>>
    %cst_119 = arith.constant -2.000000e+00 : f32
    %308 = arith.mulf %cst_119, %307 : f32
    %309 = math.exp %308 : f32
    %cst_120 = arith.constant 5.000000e-01 : f32
    %310 = arith.mulf %cst_120, %309 : f32
    %cst_121 = arith.constant 0.000000e+00 : f32
    %311 = vector.broadcast %cst_121 : f32 to vector<10x68xf32>
    %312 = arith.subf %311, %113 : vector<10x68xf32>
    %313 = vector.broadcast %306 : f32 to vector<10x68xf32>
    %314 = arith.mulf %312, %313 : vector<10x68xf32>
    %315 = math.exp %314 : vector<10x68xf32>
    %c6_122 = arith.constant 6 : index
    %316 = memref.load %arg13[%c6_122] : memref<8xf32, #tpu.memory_space<smem>>
    %317 = vector.broadcast %316 : f32 to vector<1x68xf32>
    %318 = arith.mulf %317, %302 : vector<1x68xf32>
    %319 = vector.broadcast %318 : vector<1x68xf32> to vector<10x68xf32>
    %320 = arith.mulf %315, %319 : vector<10x68xf32>
    %321 = arith.addf %290, %320 : vector<10x68xf32>
    %cst_123 = arith.constant 0.000000e+00 : f32
    %322 = vector.broadcast %cst_123 : f32 to vector<10x68xf32>
    %323 = arith.subf %322, %113 : vector<10x68xf32>
    %324 = vector.broadcast %310 : f32 to vector<10x68xf32>
    %325 = arith.mulf %323, %324 : vector<10x68xf32>
    %326 = math.exp %325 : vector<10x68xf32>
    %c6_124 = arith.constant 6 : index
    %327 = memref.load %arg16[%c6_124] : memref<8xf32, #tpu.memory_space<smem>>
    %328 = vector.broadcast %327 : f32 to vector<1x68xf32>
    %329 = arith.mulf %328, %302 : vector<1x68xf32>
    %330 = vector.broadcast %329 : vector<1x68xf32> to vector<10x68xf32>
    %331 = arith.mulf %326, %330 : vector<10x68xf32>
    %332 = arith.addf %301, %331 : vector<10x68xf32>
    %333 = vector.extract_strided_slice %108 {offsets = [7, 0], sizes = [1, 68], strides = [1, 1]} : vector<8x68xf32> to vector<1x68xf32>
    %c7 = arith.constant 7 : index
    %334 = memref.load %arg12[%c7] : memref<8xf32, #tpu.memory_space<smem>>
    %cst_125 = arith.constant -2.000000e+00 : f32
    %335 = arith.mulf %cst_125, %334 : f32
    %336 = math.exp %335 : f32
    %cst_126 = arith.constant 5.000000e-01 : f32
    %337 = arith.mulf %cst_126, %336 : f32
    %c7_127 = arith.constant 7 : index
    %338 = memref.load %arg15[%c7_127] : memref<8xf32, #tpu.memory_space<smem>>
    %cst_128 = arith.constant -2.000000e+00 : f32
    %339 = arith.mulf %cst_128, %338 : f32
    %340 = math.exp %339 : f32
    %cst_129 = arith.constant 5.000000e-01 : f32
    %341 = arith.mulf %cst_129, %340 : f32
    %cst_130 = arith.constant 0.000000e+00 : f32
    %342 = vector.broadcast %cst_130 : f32 to vector<10x68xf32>
    %343 = arith.subf %342, %113 : vector<10x68xf32>
    %344 = vector.broadcast %337 : f32 to vector<10x68xf32>
    %345 = arith.mulf %343, %344 : vector<10x68xf32>
    %346 = math.exp %345 : vector<10x68xf32>
    %c7_131 = arith.constant 7 : index
    %347 = memref.load %arg13[%c7_131] : memref<8xf32, #tpu.memory_space<smem>>
    %348 = vector.broadcast %347 : f32 to vector<1x68xf32>
    %349 = arith.mulf %348, %333 : vector<1x68xf32>
    %350 = vector.broadcast %349 : vector<1x68xf32> to vector<10x68xf32>
    %351 = arith.mulf %346, %350 : vector<10x68xf32>
    %352 = arith.addf %321, %351 : vector<10x68xf32>
    %cst_132 = arith.constant 0.000000e+00 : f32
    %353 = vector.broadcast %cst_132 : f32 to vector<10x68xf32>
    %354 = arith.subf %353, %113 : vector<10x68xf32>
    %355 = vector.broadcast %341 : f32 to vector<10x68xf32>
    %356 = arith.mulf %354, %355 : vector<10x68xf32>
    %357 = math.exp %356 : vector<10x68xf32>
    %c7_133 = arith.constant 7 : index
    %358 = memref.load %arg16[%c7_133] : memref<8xf32, #tpu.memory_space<smem>>
    %359 = vector.broadcast %358 : f32 to vector<1x68xf32>
    %360 = arith.mulf %359, %333 : vector<1x68xf32>
    %361 = vector.broadcast %360 : vector<1x68xf32> to vector<10x68xf32>
    %362 = arith.mulf %357, %361 : vector<10x68xf32>
    %363 = arith.addf %332, %362 : vector<10x68xf32>
    %cst_134 = arith.constant dense<0.000000e+00> : vector<10xf32>
    %364 = vector.multi_reduction <add>, %352, %cst_134 [1] : vector<10x68xf32> to vector<10xf32>
    %365 = vector.shape_cast %364 : vector<10xf32> to vector<10x1xf32>
    %c0_135 = arith.constant 0 : index
    %366 = memref.load %arg14[%c0_135] : memref<1xf32, #tpu.memory_space<smem>>
    %367 = vector.broadcast %366 : f32 to vector<10x1xf32>
    %368 = arith.addf %365, %367 : vector<10x1xf32>
    %cst_136 = arith.constant dense<0.000000e+00> : vector<10xf32>
    %369 = vector.multi_reduction <add>, %363, %cst_136 [1] : vector<10x68xf32> to vector<10xf32>
    %370 = vector.shape_cast %369 : vector<10xf32> to vector<10x1xf32>
    %c0_137 = arith.constant 0 : index
    %371 = memref.load %arg17[%c0_137] : memref<1xf32, #tpu.memory_space<smem>>
    %372 = vector.broadcast %371 : f32 to vector<10x1xf32>
    %373 = arith.addf %370, %372 : vector<10x1xf32>
    %cst_138 = arith.constant 0.000000e+00 : f32
    %374 = vector.broadcast %cst_138 : f32 to vector<10x1xf32>
    %375 = arith.maximumf %373, %374 : vector<10x1xf32>
    %376 = math.absf %373 : vector<10x1xf32>
    %cst_139 = arith.constant 0.000000e+00 : f32
    %377 = vector.broadcast %cst_139 : f32 to vector<10x1xf32>
    %378 = arith.subf %377, %376 : vector<10x1xf32>
    %379 = math.exp %378 : vector<10x1xf32>
    %cst_140 = arith.constant 1.000000e+00 : f32
    %380 = vector.broadcast %cst_140 : f32 to vector<10x1xf32>
    %381 = arith.addf %380, %379 : vector<10x1xf32>
    %382 = math.log %381 : vector<10x1xf32>
    %383 = arith.addf %375, %382 : vector<10x1xf32>
    %c0_141 = arith.constant 0 : index
    %c0_142 = arith.constant 0 : index
    %c0_143 = arith.constant 0 : index
    %384 = vector.load %arg18[%c0_141, %c0_142, %c0_143] : memref<1x10x1xf32, #tpu.memory_space<vmem>>, vector<1x10x1xf32>
    %385 = vector.shape_cast %384 : vector<1x10x1xf32> to vector<10x1xf32>
    %386 = vector.shape_cast %368 : vector<10x1xf32> to vector<1x10x1xf32>
    tpu.vector_store %arg18[%c0_141, %c0_142, %c0_143], %386 {strides = array<i32>} : memref<1x10x1xf32, #tpu.memory_space<vmem>>, vector<1x10x1xf32>,
    %c0_144 = arith.constant 0 : index
    %c0_145 = arith.constant 0 : index
    %c0_146 = arith.constant 0 : index
    %387 = vector.load %arg19[%c0_144, %c0_145, %c0_146] : memref<1x10x1xf32, #tpu.memory_space<vmem>>, vector<1x10x1xf32>
    %388 = vector.shape_cast %387 : vector<1x10x1xf32> to vector<10x1xf32>
    %389 = vector.shape_cast %383 : vector<10x1xf32> to vector<1x10x1xf32>
    tpu.vector_store %arg19[%c0_144, %c0_145, %c0_146], %389 {strides = array<i32>} : memref<1x10x1xf32, #tpu.memory_space<vmem>>, vector<1x10x1xf32>,
    return
  }
  func.func @transform_0(%arg0: i32) -> (i32, i32, i32) {
    %c0_i32 = arith.constant 0 : i32
    %c0_i32_0 = arith.constant 0 : i32
    %c0_i32_1 = arith.constant 0 : i32
    return %arg0, %c0_i32, %c0_i32_0 : i32, i32, i32
  }
  func.func @transform_1(%arg0: i32) -> (i32, i32, i32) {
    %c0_i32 = arith.constant 0 : i32
    %c0_i32_0 = arith.constant 0 : i32
    %c0_i32_1 = arith.constant 0 : i32
    return %arg0, %c0_i32, %c0_i32_0 : i32, i32, i32
  }
  func.func @transform_2(%arg0: i32) -> (i32, i32, i32) {
    %c0_i32 = arith.constant 0 : i32
    %c0_i32_0 = arith.constant 0 : i32
    %c0_i32_1 = arith.constant 0 : i32
    %c0_i32_2 = arith.constant 0 : i32
    return %c0_i32, %c0_i32_0, %c0_i32_1 : i32, i32, i32
  }
  func.func @transform_3(%arg0: i32) -> (i32, i32, i32) {
    %c0_i32 = arith.constant 0 : i32
    %c0_i32_0 = arith.constant 0 : i32
    %c0_i32_1 = arith.constant 0 : i32
    return %arg0, %c0_i32, %c0_i32_0 : i32, i32, i32
  }
  func.func @transform_4(%arg0: i32) -> i32 {
    %c0_i32 = arith.constant 0 : i32
    %c0_i32_0 = arith.constant 0 : i32
    return %c0_i32 : i32
  }
  func.func @transform_5(%arg0: i32) -> (i32, i32) {
    %c0_i32 = arith.constant 0 : i32
    %c0_i32_0 = arith.constant 0 : i32
    %c0_i32_1 = arith.constant 0 : i32
    return %c0_i32, %c0_i32_0 : i32, i32
  }
  func.func @transform_6(%arg0: i32) -> (i32, i32) {
    %c0_i32 = arith.constant 0 : i32
    %c0_i32_0 = arith.constant 0 : i32
    %c0_i32_1 = arith.constant 0 : i32
    return %c0_i32, %c0_i32_0 : i32, i32
  }
  func.func @transform_7(%arg0: i32) -> (i32, i32) {
    %c0_i32 = arith.constant 0 : i32
    %c0_i32_0 = arith.constant 0 : i32
    %c0_i32_1 = arith.constant 0 : i32
    return %c0_i32, %c0_i32_0 : i32, i32
  }
  func.func @transform_8(%arg0: i32) -> (i32, i32) {
    %c0_i32 = arith.constant 0 : i32
    %c0_i32_0 = arith.constant 0 : i32
    %c0_i32_1 = arith.constant 0 : i32
    return %c0_i32, %c0_i32_0 : i32, i32
  }
  func.func @transform_9(%arg0: i32) -> (i32, i32) {
    %c0_i32 = arith.constant 0 : i32
    %c0_i32_0 = arith.constant 0 : i32
    %c0_i32_1 = arith.constant 0 : i32
    return %c0_i32, %c0_i32_0 : i32, i32
  }
  func.func @transform_10(%arg0: i32) -> (i32, i32) {
    %c0_i32 = arith.constant 0 : i32
    %c0_i32_0 = arith.constant 0 : i32
    %c0_i32_1 = arith.constant 0 : i32
    return %c0_i32, %c0_i32_0 : i32, i32
  }
  func.func @transform_11(%arg0: i32) -> i32 {
    %c0_i32 = arith.constant 0 : i32
    %c0_i32_0 = arith.constant 0 : i32
    return %c0_i32 : i32
  }
  func.func @transform_12(%arg0: i32) -> i32 {
    %c0_i32 = arith.constant 0 : i32
    %c0_i32_0 = arith.constant 0 : i32
    return %c0_i32 : i32
  }
  func.func @transform_13(%arg0: i32) -> i32 {
    %c0_i32 = arith.constant 0 : i32
    %c0_i32_0 = arith.constant 0 : i32
    return %c0_i32 : i32
  }
  func.func @transform_14(%arg0: i32) -> i32 {
    %c0_i32 = arith.constant 0 : i32
    %c0_i32_0 = arith.constant 0 : i32
    return %c0_i32 : i32
  }
  func.func @transform_15(%arg0: i32) -> i32 {
    %c0_i32 = arith.constant 0 : i32
    %c0_i32_0 = arith.constant 0 : i32
    return %c0_i32 : i32
  }
  func.func @transform_16(%arg0: i32) -> i32 {
    %c0_i32 = arith.constant 0 : i32
    %c0_i32_0 = arith.constant 0 : i32
    return %c0_i32 : i32
  }
  func.func @transform_17(%arg0: i32) -> (i32, i32, i32) {
    %c0_i32 = arith.constant 0 : i32
    %c0_i32_0 = arith.constant 0 : i32
    %c0_i32_1 = arith.constant 0 : i32
    return %arg0, %c0_i32, %c0_i32_0 : i32, i32, i32
  }
  func.func @transform_18(%arg0: i32) -> (i32, i32, i32) {
    %c0_i32 = arith.constant 0 : i32
    %c0_i32_0 = arith.constant 0 : i32
    %c0_i32_1 = arith.constant 0 : i32
    return %arg0, %c0_i32, %c0_i32_0 : i32, i32, i32
  }
}

</mosaic_0001>

<llo_original>
// kernel: tpu_custom_call.1
$region0: #{tpu_custom_call.1}
  #allocation0 [shape = 'u32[]', space=smem, size = 0x4, offset = 0x4, fixed_abs, tag = 'smem constant byte address 0x4 - core index']
  #allocation1 [shape = 'u32[144,128]{1,0:T(1,128)}', space=vmem, size = 0x12000, scoped, tag = 'internal scratch']
  #allocation2 [shape = 'f32[40,72]{1,0:T(8,128)}', space=vmem, size = 0x5000, scoped, tag = 'scratch operand']
  #allocation3 [shape = 'f32[80,68]{1,0:T(8,128)}', space=vmem, size = 0xa000, scoped, tag = 'scratch operand']
  #allocation4 [shape = 'f32[1]{0:T(128)S(6)}', space=smem, size = 0x200, scoped, tag = 'scoped memory for tpu_custom_call.1']
  #allocation5 [shape = 'f32[1]{0:T(128)S(6)}', space=smem, size = 0x200, scoped, tag = 'scoped memory for tpu_custom_call.1']
  %s0 = inlined_call_operand.vmem [shape: f32[2,8,1], index: 0, kind: input, shape index: {}]
  %s1 = inlined_call_operand.vmem [shape: f32[2,8,1], index: 1, kind: input, shape index: {}]
  %s2 = inlined_call_operand.vmem [shape: f32[1,1,76], index: 2, kind: input, shape index: {}]
  %s3 = inlined_call_operand.vmem [shape: f32[2,10,1], index: 3, kind: input, shape index: {}]
  %s4 = inlined_call_operand.vmem [shape: f32[2], index: 4, kind: input, shape index: {}]
  %s5 = inlined_call_operand.vmem [shape: f32[8,2], index: 5, kind: input, shape index: {}]
  %s6 = inlined_call_operand.vmem [shape: f32[8,1], index: 6, kind: input, shape index: {}]
  %s7 = inlined_call_operand.vmem [shape: f32[16,40], index: 7, kind: input, shape index: {}]
  %s8 = inlined_call_operand.vmem [shape: f32[16,1], index: 8, kind: input, shape index: {}]
  %s9 = inlined_call_operand.vmem [shape: f32[8,80], index: 9, kind: input, shape index: {}]
  %s10 = inlined_call_operand.vmem [shape: f32[8,1], index: 10, kind: input, shape index: {}]
  %s11 = inlined_call_operand.vmem [shape: f32[8], index: 11, kind: input, shape index: {}]
  %s12 = inlined_call_operand.vmem [shape: f32[8], index: 12, kind: input, shape index: {}]
  %s13 = inlined_call_operand.<no memory space> [shape: f32[1], index: 13, kind: input, shape index: {}]
  %s14 = inlined_call_operand.vmem [shape: f32[8], index: 14, kind: input, shape index: {}]
  %s15 = inlined_call_operand.vmem [shape: f32[8], index: 15, kind: input, shape index: {}]
  %s16 = inlined_call_operand.<no memory space> [shape: f32[1], index: 16, kind: input, shape index: {}]
  %s17 = inlined_call_operand.vmem [shape: f32[2,10,1], index: 17, kind: output, shape index: {0}]
  %s18 = inlined_call_operand.vmem [shape: f32[2,10,1], index: 18, kind: output, shape index: {1}]
  %19 = xla_tuple %s17, %s18
  %s20 = sld [smem:[#allocation0]]
  $region129: #{tpu_custom_call.1} parent=0
    _
  %s22 = ssub.s32 1, %s20
  %s23 = scalar_select 0, %s22, %s20
  %24 = sst [smem:[#allocation4]] %s13
  %25 = sst [smem:[#allocation5]] %s16
  $region1: #{tpu_custom_call.1} parent=0
    #allocation6 [shape = 'u8[512]{0}', space=smem, size = 0x200, scoped, tag = 'input window, operand 4, single buffered']
    #allocation7 [shape = 's32[2]{0}', space=sflag, size = 0x8, scoped, tag = 'scoped memory for tpu_custom_call.1']
    #allocation8 [shape = 'u8[512]{0}', space=smem, size = 0x200, scoped, tag = 'input window, operand 11, single buffered']
    #allocation9 [shape = 's32[1]{0}', space=sflag, size = 0x4, scoped, tag = 'scoped memory for tpu_custom_call.1']
    #allocation10 [shape = 'u8[512]{0}', space=smem, size = 0x200, scoped, tag = 'input window, operand 12, single buffered']
    #allocation11 [shape = 'u8[512]{0}', space=smem, size = 0x200, scoped, tag = 'input window, operand 14, single buffered']
    #allocation12 [shape = 's32[1]{0}', space=sflag, size = 0x4, scoped, tag = 'scoped memory for tpu_custom_call.1']
    #allocation13 [shape = 'u8[512]{0}', space=smem, size = 0x200, scoped, tag = 'input window, operand 15, single buffered']
    %26 = vsyncpa [#allocation7], 0
    %27 = vsyncpa [#allocation9], 0
    %28 = vsyncpa [#allocation12], 0
    loop: start=0, step=1, limit=4
    $region2: #{tpu_custom_call.1} parent=1 // loop_pre_header
      _
    $region3: #{tpu_custom_call.1} parent=1 // loop_header
      %s30 = sphi 0, %s34
      %p31 = scmp.ge.s32.totalorder %s30, 4
      %s40 = sphi 0, %s42
      %s43 = sphi 0, %s40
      %s44 = sphi 0, %s43
      %s60 = sphi 0, %s44
      %s66 = sphi 0, %s68
      %s69 = sphi 0, %s66
      %s70 = sphi 0, %s69
      %s86 = sphi 0, %s70
      %s90 = sphi 0, %s90
      %s92 = sphi 0, %s90
      %s93 = sphi 0, %s92
      %s107 = sphi 0, %s93
      %s113 = sphi 0, %s115
      %s116 = sphi 0, %s113
      %s117 = sphi 0, %s116
      %s133 = sphi 0, %s117
      %s137 = sphi 0, %s137
      %s139 = sphi 0, %s137
      %s140 = sphi 0, %s139
      %s154 = sphi 0, %s140
      %s158 = sphi 0, %s158
      %s160 = sphi 0, %s158
      %s161 = sphi 0, %s160
      %s175 = sphi 0, %s161
      %s179 = sphi 0, %s179
      %s181 = sphi 0, %s179
      %s182 = sphi 0, %s181
      %s196 = sphi 0, %s182
      %s200 = sphi 0, %s200
      %s202 = sphi 0, %s200
      %s203 = sphi 0, %s202
      %s217 = sphi 0, %s203
      %s221 = sphi 0, %s221
      %s223 = sphi 0, %s221
      %s224 = sphi 0, %s223
      %s238 = sphi 0, %s224
      %s242 = sphi 0, %s242
      %s244 = sphi 0, %s242
      %s245 = sphi 0, %s244
      %s259 = sphi 0, %s245
      %s263 = sphi 0, %s263
      %s265 = sphi 0, %s263
      %s266 = sphi 0, %s265
      %s280 = sphi 0, %s266
      %s284 = sphi 0, %s284
      %s286 = sphi 0, %s284
      %s287 = sphi 0, %s286
      %s301 = sphi 0, %s287
      %s305 = sphi 0, %s305
      %s307 = sphi 0, %s305
      %s308 = sphi 0, %s307
      %s322 = sphi 0, %s308
      %s326 = sphi 0, %s326
      %s328 = sphi 0, %s326
      %s329 = sphi 0, %s328
      %s343 = sphi 0, %s329
      %s347 = sphi 0, %s347
      %s349 = sphi 0, %s347
      %s350 = sphi 0, %s349
      %s364 = sphi 0, %s350
      %s368 = sphi 0, %s368
      %s370 = sphi 0, %s368
      %s371 = sphi 0, %s370
      %s385 = sphi 0, %s371
      %s389 = sphi 0, %s389
      %s391 = sphi 0, %s389
      %s392 = sphi 0, %s391
      %s406 = sphi 0, %s392
      %s412 = sphi 0, %s414
      %s415 = sphi 0, %s412
      %s416 = sphi 0, %s415
      %s432 = sphi 0, %s416
      %s438 = sphi 0, %s440
      %s441 = sphi 0, %s438
      %s442 = sphi 0, %s441
      %s458 = sphi 0, %s442
    $region4: #{tpu_custom_call.1} parent=1 // loop_header_branch
      %33 = sbr.rel (%p31) target = $region8
    $region5: #{tpu_custom_call.1} parent=1 // loop_body
      %s35 = ssub.s32 %s30, 1
      %s36 = ssub.s32 %s30, 2
      %s37 = sadd.s32 %s30, 1
      %s38 = ssub.s32 %s30, %s37
      %p39 = scmp.eq.s32.totalorder %s38, 0
      %s41 = sadd.s32 %s40, 1
      %s42 = scalar_select %p39, %s40, %s41
      %p45 = pneg %p39
      %p46 = scmp.eq.s32.totalorder %s30, 1
      %p47 = por %p45, %p46
      %p48 = scmp.ne.s32.totalorder %s40, %s43
      %p49 = scmp.eq.s32.totalorder %s30, 0
      %p50 = por %p48, %p49
      %p51 = scmp.ne.s32.totalorder %s40, %s43
      %p52 = scmp.eq.s32.totalorder %s35, 1
      %p53 = por %p51, %p52
      %p54 = scmp.ne.s32.totalorder %s43, %s44
      %p55 = scmp.eq.s32.totalorder %s35, 0
      %p56 = por %p54, %p55
      %p57 = scmp.ne.s32.totalorder %s43, %s44
      %p58 = scmp.eq.s32.totalorder %s36, 1
      %p59 = por %p57, %p58
      %p61 = scmp.ne.s32.totalorder %s44, %s60
      %p62 = scmp.eq.s32.totalorder %s36, 0
      %p63 = por %p61, %p62
      %s64 = ssub.s32 %s30, %s37
      %p65 = scmp.eq.s32.totalorder %s64, 0
      %s67 = sadd.s32 %s66, 1
      %s68 = scalar_select %p65, %s66, %s67
      %p71 = pneg %p65
      %p72 = scmp.eq.s32.totalorder %s30, 1
      %p73 = por %p71, %p72
      %p74 = scmp.ne.s32.totalorder %s66, %s69
      %p75 = scmp.eq.s32.totalorder %s30, 0
      %p76 = por %p74, %p75
      %p77 = scmp.ne.s32.totalorder %s66, %s69
      %p78 = scmp.eq.s32.totalorder %s35, 1
      %p79 = por %p77, %p78
      %p80 = scmp.ne.s32.totalorder %s69, %s70
      %p81 = scmp.eq.s32.totalorder %s35, 0
      %p82 = por %p80, %p81
      %p83 = scmp.ne.s32.totalorder %s69, %s70
      %p84 = scmp.eq.s32.totalorder %s36, 1
      %p85 = por %p83, %p84
      %p87 = scmp.ne.s32.totalorder %s70, %s86
      %p88 = scmp.eq.s32.totalorder %s36, 0
      %p89 = por %p87, %p88
      %s91 = sadd.s32 %s90, 1
      %p94 = scmp.eq.s32.totalorder %s30, 1
      %p95 = scmp.ne.s32.totalorder %s90, %s92
      %p96 = scmp.eq.s32.totalorder %s30, 0
      %p97 = por %p95, %p96
      %p98 = scmp.ne.s32.totalorder %s90, %s92
      %p99 = scmp.eq.s32.totalorder %s35, 1
      %p100 = por %p98, %p99
      %p101 = scmp.ne.s32.totalorder %s92, %s93
      %p102 = scmp.eq.s32.totalorder %s35, 0
      %p103 = por %p101, %p102
      %p104 = scmp.ne.s32.totalorder %s92, %s93
      %p105 = scmp.eq.s32.totalorder %s36, 1
      %p106 = por %p104, %p105
      %p108 = scmp.ne.s32.totalorder %s93, %s107
      %p109 = scmp.eq.s32.totalorder %s36, 0
      %p110 = por %p108, %p109
      %s111 = ssub.s32 %s30, %s37
      %p112 = scmp.eq.s32.totalorder %s111, 0
      %s114 = sadd.s32 %s113, 1
      %s115 = scalar_select %p112, %s113, %s114
      %p118 = pneg %p112
      %p119 = scmp.eq.s32.totalorder %s30, 1
      %p120 = por %p118, %p119
      %p121 = scmp.ne.s32.totalorder %s113, %s116
      %p122 = scmp.eq.s32.totalorder %s30, 0
      %p123 = por %p121, %p122
      %p124 = scmp.ne.s32.totalorder %s113, %s116
      %p125 = scmp.eq.s32.totalorder %s35, 1
      %p126 = por %p124, %p125
      %p127 = scmp.ne.s32.totalorder %s116, %s117
      %p128 = scmp.eq.s32.totalorder %s35, 0
      %p129 = por %p127, %p128
      %p130 = scmp.ne.s32.totalorder %s116, %s117
      %p131 = scmp.eq.s32.totalorder %s36, 1
      %p132 = por %p130, %p131
      %p134 = scmp.ne.s32.totalorder %s117, %s133
      %p135 = scmp.eq.s32.totalorder %s36, 0
      %p136 = por %p134, %p135
      %s138 = sadd.s32 %s137, 1
      %p141 = scmp.eq.s32.totalorder %s30, 1
      %p142 = scmp.ne.s32.totalorder %s137, %s139
      %p143 = scmp.eq.s32.totalorder %s30, 0
      %p144 = por %p142, %p143
      %p145 = scmp.ne.s32.totalorder %s137, %s139
      %p146 = scmp.eq.s32.totalorder %s35, 1
      %p147 = por %p145, %p146
      %p148 = scmp.ne.s32.totalorder %s139, %s140
      %p149 = scmp.eq.s32.totalorder %s35, 0
      %p150 = por %p148, %p149
      %p151 = scmp.ne.s32.totalorder %s139, %s140
      %p152 = scmp.eq.s32.totalorder %s36, 1
      %p153 = por %p151, %p152
      %p155 = scmp.ne.s32.totalorder %s140, %s154
      %p156 = scmp.eq.s32.totalorder %s36, 0
      %p157 = por %p155, %p156
      %s159 = sadd.s32 %s158, 1
      %p162 = scmp.eq.s32.totalorder %s30, 1
      %p163 = scmp.ne.s32.totalorder %s158, %s160
      %p164 = scmp.eq.s32.totalorder %s30, 0
      %p165 = por %p163, %p164
      %p166 = scmp.ne.s32.totalorder %s158, %s160
      %p167 = scmp.eq.s32.totalorder %s35, 1
      %p168 = por %p166, %p167
      %p169 = scmp.ne.s32.totalorder %s160, %s161
      %p170 = scmp.eq.s32.totalorder %s35, 0
      %p171 = por %p169, %p170
      %p172 = scmp.ne.s32.totalorder %s160, %s161
      %p173 = scmp.eq.s32.totalorder %s36, 1
      %p174 = por %p172, %p173
      %p176 = scmp.ne.s32.totalorder %s161, %s175
      %p177 = scmp.eq.s32.totalorder %s36, 0
      %p178 = por %p176, %p177
      %s180 = sadd.s32 %s179, 1
      %p183 = scmp.eq.s32.totalorder %s30, 1
      %p184 = scmp.ne.s32.totalorder %s179, %s181
      %p185 = scmp.eq.s32.totalorder %s30, 0
      %p186 = por %p184, %p185
      %p187 = scmp.ne.s32.totalorder %s179, %s181
      %p188 = scmp.eq.s32.totalorder %s35, 1
      %p189 = por %p187, %p188
      %p190 = scmp.ne.s32.totalorder %s181, %s182
      %p191 = scmp.eq.s32.totalorder %s35, 0
      %p192 = por %p190, %p191
      %p193 = scmp.ne.s32.totalorder %s181, %s182
      %p194 = scmp.eq.s32.totalorder %s36, 1
      %p195 = por %p193, %p194
      %p197 = scmp.ne.s32.totalorder %s182, %s196
      %p198 = scmp.eq.s32.totalorder %s36, 0
      %p199 = por %p197, %p198
      %s201 = sadd.s32 %s200, 1
      %p204 = scmp.eq.s32.totalorder %s30, 1
      %p205 = scmp.ne.s32.totalorder %s200, %s202
      %p206 = scmp.eq.s32.totalorder %s30, 0
      %p207 = por %p205, %p206
      %p208 = scmp.ne.s32.totalorder %s200, %s202
      %p209 = scmp.eq.s32.totalorder %s35, 1
      %p210 = por %p208, %p209
      %p211 = scmp.ne.s32.totalorder %s202, %s203
      %p212 = scmp.eq.s32.totalorder %s35, 0
      %p213 = por %p211, %p212
      %p214 = scmp.ne.s32.totalorder %s202, %s203
      %p215 = scmp.eq.s32.totalorder %s36, 1
      %p216 = por %p214, %p215
      %p218 = scmp.ne.s32.totalorder %s203, %s217
      %p219 = scmp.eq.s32.totalorder %s36, 0
      %p220 = por %p218, %p219
      %s222 = sadd.s32 %s221, 1
      %p225 = scmp.eq.s32.totalorder %s30, 1
      %p226 = scmp.ne.s32.totalorder %s221, %s223
      %p227 = scmp.eq.s32.totalorder %s30, 0
      %p228 = por %p226, %p227
      %p229 = scmp.ne.s32.totalorder %s221, %s223
      %p230 = scmp.eq.s32.totalorder %s35, 1
      %p231 = por %p229, %p230
      %p232 = scmp.ne.s32.totalorder %s223, %s224
      %p233 = scmp.eq.s32.totalorder %s35, 0
      %p234 = por %p232, %p233
      %p235 = scmp.ne.s32.totalorder %s223, %s224
      %p236 = scmp.eq.s32.totalorder %s36, 1
      %p237 = por %p235, %p236
      %p239 = scmp.ne.s32.totalorder %s224, %s238
      %p240 = scmp.eq.s32.totalorder %s36, 0
      %p241 = por %p239, %p240
      %s243 = sadd.s32 %s242, 1
      %p246 = scmp.eq.s32.totalorder %s30, 1
      %p247 = scmp.ne.s32.totalorder %s242, %s244
      %p248 = scmp.eq.s32.totalorder %s30, 0
      %p249 = por %p247, %p248
      %p250 = scmp.ne.s32.totalorder %s242, %s244
      %p251 = scmp.eq.s32.totalorder %s35, 1
      %p252 = por %p250, %p251
      %p253 = scmp.ne.s32.totalorder %s244, %s245
      %p254 = scmp.eq.s32.totalorder %s35, 0
      %p255 = por %p253, %p254
      %p256 = scmp.ne.s32.totalorder %s244, %s245
      %p257 = scmp.eq.s32.totalorder %s36, 1
      %p258 = por %p256, %p257
      %p260 = scmp.ne.s32.totalorder %s245, %s259
      %p261 = scmp.eq.s32.totalorder %s36, 0
      %p262 = por %p260, %p261
      %s264 = sadd.s32 %s263, 1
      %p267 = scmp.eq.s32.totalorder %s30, 1
      %p268 = scmp.ne.s32.totalorder %s263, %s265
      %p269 = scmp.eq.s32.totalorder %s30, 0
      %p270 = por %p268, %p269
      %p271 = scmp.ne.s32.totalorder %s263, %s265
      %p272 = scmp.eq.s32.totalorder %s35, 1
      %p273 = por %p271, %p272
      %p274 = scmp.ne.s32.totalorder %s265, %s266
      %p275 = scmp.eq.s32.totalorder %s35, 0
      %p276 = por %p274, %p275
      %p277 = scmp.ne.s32.totalorder %s265, %s266
      %p278 = scmp.eq.s32.totalorder %s36, 1
      %p279 = por %p277, %p278
      %p281 = scmp.ne.s32.totalorder %s266, %s280
      %p282 = scmp.eq.s32.totalorder %s36, 0
      %p283 = por %p281, %p282
      %s285 = sadd.s32 %s284, 1
      %p288 = scmp.eq.s32.totalorder %s30, 1
      %p289 = scmp.ne.s32.totalorder %s284, %s286
      %p290 = scmp.eq.s32.totalorder %s30, 0
      %p291 = por %p289, %p290
      %p292 = scmp.ne.s32.totalorder %s284, %s286
      %p293 = scmp.eq.s32.totalorder %s35, 1
      %p294 = por %p292, %p293
      %p295 = scmp.ne.s32.totalorder %s286, %s287
      %p296 = scmp.eq.s32.totalorder %s35, 0
      %p297 = por %p295, %p296
      %p298 = scmp.ne.s32.totalorder %s286, %s287
      %p299 = scmp.eq.s32.totalorder %s36, 1
      %p300 = por %p298, %p299
      %p302 = scmp.ne.s32.totalorder %s287, %s301
      %p303 = scmp.eq.s32.totalorder %s36, 0
      %p304 = por %p302, %p303
      %s306 = sadd.s32 %s305, 1
      %p309 = scmp.eq.s32.totalorder %s30, 1
      %p310 = scmp.ne.s32.totalorder %s305, %s307
      %p311 = scmp.eq.s32.totalorder %s30, 0
      %p312 = por %p310, %p311
      %p313 = scmp.ne.s32.totalorder %s305, %s307
      %p314 = scmp.eq.s32.totalorder %s35, 1
      %p315 = por %p313, %p314
      %p316 = scmp.ne.s32.totalorder %s307, %s308
      %p317 = scmp.eq.s32.totalorder %s35, 0
      %p318 = por %p316, %p317
      %p319 = scmp.ne.s32.totalorder %s307, %s308
      %p320 = scmp.eq.s32.totalorder %s36, 1
      %p321 = por %p319, %p320
      %p323 = scmp.ne.s32.totalorder %s308, %s322
      %p324 = scmp.eq.s32.totalorder %s36, 0
      %p325 = por %p323, %p324
      %s327 = sadd.s32 %s326, 1
      %p330 = scmp.eq.s32.totalorder %s30, 1
      %p331 = scmp.ne.s32.totalorder %s326, %s328
      %p332 = scmp.eq.s32.totalorder %s30, 0
      %p333 = por %p331, %p332
      %p334 = scmp.ne.s32.totalorder %s326, %s328
      %p335 = scmp.eq.s32.totalorder %s35, 1
      %p336 = por %p334, %p335
      %p337 = scmp.ne.s32.totalorder %s328, %s329
      %p338 = scmp.eq.s32.totalorder %s35, 0
      %p339 = por %p337, %p338
      %p340 = scmp.ne.s32.totalorder %s328, %s329
      %p341 = scmp.eq.s32.totalorder %s36, 1
      %p342 = por %p340, %p341
      %p344 = scmp.ne.s32.totalorder %s329, %s343
      %p345 = scmp.eq.s32.totalorder %s36, 0
      %p346 = por %p344, %p345
      %s348 = sadd.s32 %s347, 1
      %p351 = scmp.eq.s32.totalorder %s30, 1
      %p352 = scmp.ne.s32.totalorder %s347, %s349
      %p353 = scmp.eq.s32.totalorder %s30, 0
      %p354 = por %p352, %p353
      %p355 = scmp.ne.s32.totalorder %s347, %s349
      %p356 = scmp.eq.s32.totalorder %s35, 1
      %p357 = por %p355, %p356
      %p358 = scmp.ne.s32.totalorder %s349, %s350
      %p359 = scmp.eq.s32.totalorder %s35, 0
      %p360 = por %p358, %p359
      %p361 = scmp.ne.s32.totalorder %s349, %s350
      %p362 = scmp.eq.s32.totalorder %s36, 1
      %p363 = por %p361, %p362
      %p365 = scmp.ne.s32.totalorder %s350, %s364
      %p366 = scmp.eq.s32.totalorder %s36, 0
      %p367 = por %p365, %p366
      %s369 = sadd.s32 %s368, 1
      %p372 = scmp.eq.s32.totalorder %s30, 1
      %p373 = scmp.ne.s32.totalorder %s368, %s370
      %p374 = scmp.eq.s32.totalorder %s30, 0
      %p375 = por %p373, %p374
      %p376 = scmp.ne.s32.totalorder %s368, %s370
      %p377 = scmp.eq.s32.totalorder %s35, 1
      %p378 = por %p376, %p377
      %p379 = scmp.ne.s32.totalorder %s370, %s371
      %p380 = scmp.eq.s32.totalorder %s35, 0
      %p381 = por %p379, %p380
      %p382 = scmp.ne.s32.totalorder %s370, %s371
      %p383 = scmp.eq.s32.totalorder %s36, 1
      %p384 = por %p382, %p383
      %p386 = scmp.ne.s32.totalorder %s371, %s385
      %p387 = scmp.eq.s32.totalorder %s36, 0
      %p388 = por %p386, %p387
      %s390 = sadd.s32 %s389, 1
      %p393 = scmp.eq.s32.totalorder %s30, 1
      %p394 = scmp.ne.s32.totalorder %s389, %s391
      %p395 = scmp.eq.s32.totalorder %s30, 0
      %p396 = por %p394, %p395
      %p397 = scmp.ne.s32.totalorder %s389, %s391
      %p398 = scmp.eq.s32.totalorder %s35, 1
      %p399 = por %p397, %p398
      %p400 = scmp.ne.s32.totalorder %s391, %s392
      %p401 = scmp.eq.s32.totalorder %s35, 0
      %p402 = por %p400, %p401
      %p403 = scmp.ne.s32.totalorder %s391, %s392
      %p404 = scmp.eq.s32.totalorder %s36, 1
      %p405 = por %p403, %p404
      %p407 = scmp.ne.s32.totalorder %s392, %s406
      %p408 = scmp.eq.s32.totalorder %s36, 0
      %p409 = por %p407, %p408
      %s410 = ssub.s32 %s30, %s37
      %p411 = scmp.eq.s32.totalorder %s410, 0
      %s413 = sadd.s32 %s412, 1
      %s414 = scalar_select %p411, %s412, %s413
      %p417 = pneg %p411
      %p418 = scmp.eq.s32.totalorder %s30, 1
      %p419 = por %p417, %p418
      %p420 = scmp.ne.s32.totalorder %s412, %s415
      %p421 = scmp.eq.s32.totalorder %s30, 0
      %p422 = por %p420, %p421
      %p423 = scmp.ne.s32.totalorder %s412, %s415
      %p424 = scmp.eq.s32.totalorder %s35, 1
      %p425 = por %p423, %p424
      %p426 = scmp.ne.s32.totalorder %s415, %s416
      %p427 = scmp.eq.s32.totalorder %s35, 0
      %p428 = por %p426, %p427
      %p429 = scmp.ne.s32.totalorder %s415, %s416
      %p430 = scmp.eq.s32.totalorder %s36, 1
      %p431 = por %p429, %p430
      %p433 = scmp.ne.s32.totalorder %s416, %s432
      %p434 = scmp.eq.s32.totalorder %s36, 0
      %p435 = por %p433, %p434
      %s436 = ssub.s32 %s30, %s37
      %p437 = scmp.eq.s32.totalorder %s436, 0
      %s439 = sadd.s32 %s438, 1
      %s440 = scalar_select %p437, %s438, %s439
      %p443 = pneg %p437
      %p444 = scmp.eq.s32.totalorder %s30, 1
      %p445 = por %p443, %p444
      %p446 = scmp.ne.s32.totalorder %s438, %s441
      %p447 = scmp.eq.s32.totalorder %s30, 0
      %p448 = por %p446, %p447
      %p449 = scmp.ne.s32.totalorder %s438, %s441
      %p450 = scmp.eq.s32.totalorder %s35, 1
      %p451 = por %p449, %p450
      %p452 = scmp.ne.s32.totalorder %s441, %s442
      %p453 = scmp.eq.s32.totalorder %s35, 0
      %p454 = por %p452, %p453
      %p455 = scmp.ne.s32.totalorder %s441, %s442
      %p456 = scmp.eq.s32.totalorder %s36, 1
      %p457 = por %p455, %p456
      %p459 = scmp.ne.s32.totalorder %s442, %s458
      %p460 = scmp.eq.s32.totalorder %s36, 0
      %p461 = por %p459, %p460
      %p462 = scmp.le.s32.totalorder 1, %s30
      %p463 = scmp.lt.s32.totalorder %s30, 3
      %p464 = pnand %p462, %p463
      %p465 = pneg %p464
      // Predicated region
      $region9: #{tpu_custom_call.1} parent=5 // pred_check
        _
      $region10: #{tpu_custom_call.1} parent=5 // pred_check_branch
        %467 = sbr.rel (%p464) target = $region12
      $region11: #{tpu_custom_call.1} parent=5 // pred_region
        %s468 = ssub.s32 %s30, 1
        // Predicated region
        $region13: #{tpu_custom_call.1} parent=11 // pred_check
          %p469 = pneg %p103
        $region14: #{tpu_custom_call.1} parent=11 // pred_check_branch
          %471 = sbr.rel (%p469) target = $region16
        $region15: #{tpu_custom_call.1} parent=11 // pred_region
          _
        $region16: #{tpu_custom_call.1} parent=11 // pred_fallthru
          _
        // Predicated region
        $region17: #{tpu_custom_call.1} parent=11 // pred_check
          %p472 = pneg %p150
        $region18: #{tpu_custom_call.1} parent=11 // pred_check_branch
          %474 = sbr.rel (%p472) target = $region20
        $region19: #{tpu_custom_call.1} parent=11 // pred_region
          %s476 = ssub.s32 16, 16
          %477 = vsyncadd [#allocation7], %s476
          %s479 = sshll.u32 %s4, 4
          %s480 = int_to_ptr.vmem [resolvable:$true] %s479
          %482 = dma.vmem_to_smem %s480, 16, [#allocation6], [#allocation7]
        $region20: #{tpu_custom_call.1} parent=11 // pred_fallthru
          _
        // Predicated region
        $region21: #{tpu_custom_call.1} parent=11 // pred_check
          %p483 = pneg %p171
        $region22: #{tpu_custom_call.1} parent=11 // pred_check_branch
          %485 = sbr.rel (%p483) target = $region24
        $region23: #{tpu_custom_call.1} parent=11 // pred_region
          _
        $region24: #{tpu_custom_call.1} parent=11 // pred_fallthru
          _
        // Predicated region
        $region25: #{tpu_custom_call.1} parent=11 // pred_check
          %p486 = pneg %p192
        $region26: #{tpu_custom_call.1} parent=11 // pred_check_branch
          %488 = sbr.rel (%p486) target = $region28
        $region27: #{tpu_custom_call.1} parent=11 // pred_region
          _
        $region28: #{tpu_custom_call.1} parent=11 // pred_fallthru
          _
        // Predicated region
        $region29: #{tpu_custom_call.1} parent=11 // pred_check
          %p489 = pneg %p213
        $region30: #{tpu_custom_call.1} parent=11 // pred_check_branch
          %491 = sbr.rel (%p489) target = $region32
        $region31: #{tpu_custom_call.1} parent=11 // pred_region
          _
        $region32: #{tpu_custom_call.1} parent=11 // pred_fallthru
          _
        // Predicated region
        $region33: #{tpu_custom_call.1} parent=11 // pred_check
          %p492 = pneg %p234
        $region34: #{tpu_custom_call.1} parent=11 // pred_check_branch
          %494 = sbr.rel (%p492) target = $region36
        $region35: #{tpu_custom_call.1} parent=11 // pred_region
          _
        $region36: #{tpu_custom_call.1} parent=11 // pred_fallthru
          _
        // Predicated region
        $region37: #{tpu_custom_call.1} parent=11 // pred_check
          %p495 = pneg %p255
        $region38: #{tpu_custom_call.1} parent=11 // pred_check_branch
          %497 = sbr.rel (%p495) target = $region40
        $region39: #{tpu_custom_call.1} parent=11 // pred_region
          _
        $region40: #{tpu_custom_call.1} parent=11 // pred_fallthru
          _
        // Predicated region
        $region41: #{tpu_custom_call.1} parent=11 // pred_check
          %p498 = pneg %p276
        $region42: #{tpu_custom_call.1} parent=11 // pred_check_branch
          %500 = sbr.rel (%p498) target = $region44
        $region43: #{tpu_custom_call.1} parent=11 // pred_region
          _
        $region44: #{tpu_custom_call.1} parent=11 // pred_fallthru
          _
        // Predicated region
        $region45: #{tpu_custom_call.1} parent=11 // pred_check
          %p501 = pneg %p297
        $region46: #{tpu_custom_call.1} parent=11 // pred_check_branch
          %503 = sbr.rel (%p501) target = $region48
        $region47: #{tpu_custom_call.1} parent=11 // pred_region
          %s505 = ssub.s32 16, 16
          %506 = vsyncadd [#allocation9], %s505
          %s508 = sshll.u32 %s11, 4
          %s509 = int_to_ptr.vmem [resolvable:$true] %s508
          %511 = dma.vmem_to_smem %s509, 16, [#allocation8], [#allocation9]
        $region48: #{tpu_custom_call.1} parent=11 // pred_fallthru
          _
        // Predicated region
        $region49: #{tpu_custom_call.1} parent=11 // pred_check
          %p512 = pneg %p318
        $region50: #{tpu_custom_call.1} parent=11 // pred_check_branch
          %514 = sbr.rel (%p512) target = $region52
        $region51: #{tpu_custom_call.1} parent=11 // pred_region
          %s516 = ssub.s32 16, 16
          %517 = vsyncadd [#allocation9], %s516
          %s519 = sshll.u32 %s12, 4
          %s520 = int_to_ptr.vmem [resolvable:$true] %s519
          %522 = dma.vmem_to_smem %s520, 16, [#allocation10], [#allocation9]
        $region52: #{tpu_custom_call.1} parent=11 // pred_fallthru
          _
        // Predicated region
        $region53: #{tpu_custom_call.1} parent=11 // pred_check
          %p523 = pneg %p339
        $region54: #{tpu_custom_call.1} parent=11 // pred_check_branch
          %525 = sbr.rel (%p523) target = $region56
        $region55: #{tpu_custom_call.1} parent=11 // pred_region
          _
        $region56: #{tpu_custom_call.1} parent=11 // pred_fallthru
          _
        // Predicated region
        $region57: #{tpu_custom_call.1} parent=11 // pred_check
          %p526 = pneg %p360
        $region58: #{tpu_custom_call.1} parent=11 // pred_check_branch
          %528 = sbr.rel (%p526) target = $region60
        $region59: #{tpu_custom_call.1} parent=11 // pred_region
          %s530 = ssub.s32 16, 16
          %531 = vsyncadd [#allocation12], %s530
          %s533 = sshll.u32 %s14, 4
          %s534 = int_to_ptr.vmem [resolvable:$true] %s533
          %536 = dma.vmem_to_smem %s534, 16, [#allocation11], [#allocation12]
        $region60: #{tpu_custom_call.1} parent=11 // pred_fallthru
          _
        // Predicated region
        $region61: #{tpu_custom_call.1} parent=11 // pred_check
          %p537 = pneg %p381
        $region62: #{tpu_custom_call.1} parent=11 // pred_check_branch
          %539 = sbr.rel (%p537) target = $region64
        $region63: #{tpu_custom_call.1} parent=11 // pred_region
          %s541 = ssub.s32 16, 16
          %542 = vsyncadd [#allocation12], %s541
          %s544 = sshll.u32 %s15, 4
          %s545 = int_to_ptr.vmem [resolvable:$true] %s544
          %547 = dma.vmem_to_smem %s545, 16, [#allocation13], [#allocation12]
        $region64: #{tpu_custom_call.1} parent=11 // pred_fallthru
          _
        // Predicated region
        $region65: #{tpu_custom_call.1} parent=11 // pred_check
          %p548 = pneg %p402
        $region66: #{tpu_custom_call.1} parent=11 // pred_check_branch
          %550 = sbr.rel (%p548) target = $region68
        $region67: #{tpu_custom_call.1} parent=11 // pred_region
          _
        $region68: #{tpu_custom_call.1} parent=11 // pred_fallthru
          _
      $region12: #{tpu_custom_call.1} parent=5 // pred_fallthru
        _
      %p551 = scmp.lt.s32.totalorder %s30, 2
      // Predicated region
      $region69: #{tpu_custom_call.1} parent=5 // pred_check
        %p552 = pneg %p551
      $region70: #{tpu_custom_call.1} parent=5 // pred_check_branch
        %554 = sbr.rel (%p552) target = $region72
      $region71: #{tpu_custom_call.1} parent=5 // pred_region
        // Predicated region
        $region73: #{tpu_custom_call.1} parent=71 // pred_check
          %p555 = pneg %p50
        $region74: #{tpu_custom_call.1} parent=71 // pred_check_branch
          %557 = sbr.rel (%p555) target = $region76
        $region75: #{tpu_custom_call.1} parent=71 // pred_region
          %p558 = scmp.lt.s32.totalorder %s30, 1
          %s559 = scalar_select %p558, %s30, 1
          %s560 = smul.addr %s559, 8
          %s561 = scalar_lea.vmem %s0, %s560
        $region76: #{tpu_custom_call.1} parent=71 // pred_fallthru
          _
        // Predicated region
        $region77: #{tpu_custom_call.1} parent=71 // pred_check
          %p562 = pneg %p76
        $region78: #{tpu_custom_call.1} parent=71 // pred_check_branch
          %564 = sbr.rel (%p562) target = $region80
        $region79: #{tpu_custom_call.1} parent=71 // pred_region
          %p565 = scmp.lt.s32.totalorder %s30, 1
          %s566 = scalar_select %p565, %s30, 1
          %s567 = smul.addr %s566, 8
          %s568 = scalar_lea.vmem %s1, %s567
        $region80: #{tpu_custom_call.1} parent=71 // pred_fallthru
          _
        // Predicated region
        $region81: #{tpu_custom_call.1} parent=71 // pred_check
          %p569 = pneg %p123
        $region82: #{tpu_custom_call.1} parent=71 // pred_check_branch
          %571 = sbr.rel (%p569) target = $region84
        $region83: #{tpu_custom_call.1} parent=71 // pred_region
          %p572 = scmp.lt.s32.totalorder %s30, 1
          %s573 = scalar_select %p572, %s30, 1
          %s574 = smul.addr %s573, 2
          %s575 = smul.addr %s574, 8
          %s576 = scalar_lea.vmem %s3, %s575
        $region84: #{tpu_custom_call.1} parent=71 // pred_fallthru
          _
      $region72: #{tpu_custom_call.1} parent=5 // pred_fallthru
        _
      %p577 = scmp.le.s32.totalorder 1, %s30
      %p578 = scmp.lt.s32.totalorder %s30, 3
      %p579 = pnand %p577, %p578
      %p580 = pneg %p579
      // Predicated region
      $region85: #{tpu_custom_call.1} parent=5 // pred_check
        _
      $region86: #{tpu_custom_call.1} parent=5 // pred_check_branch
        %582 = sbr.rel (%p579) target = $region88
      $region87: #{tpu_custom_call.1} parent=5 // pred_region
        %s583 = ssub.s32 %s30, 1
        // Predicated region
        $region89: #{tpu_custom_call.1} parent=87 // pred_check
          %p584 = pneg %p150
        $region90: #{tpu_custom_call.1} parent=87 // pred_check_branch
          %586 = sbr.rel (%p584) target = $region92
        $region91: #{tpu_custom_call.1} parent=87 // pred_region
          %587 = dma.done [#allocation7], 16
        $region92: #{tpu_custom_call.1} parent=87 // pred_fallthru
          _
        // Predicated region
        $region93: #{tpu_custom_call.1} parent=87 // pred_check
          %p588 = pneg %p297
        $region94: #{tpu_custom_call.1} parent=87 // pred_check_branch
          %590 = sbr.rel (%p588) target = $region96
        $region95: #{tpu_custom_call.1} parent=87 // pred_region
          %591 = dma.done [#allocation9], 16
        $region96: #{tpu_custom_call.1} parent=87 // pred_fallthru
          _
        // Predicated region
        $region97: #{tpu_custom_call.1} parent=87 // pred_check
          %p592 = pneg %p318
        $region98: #{tpu_custom_call.1} parent=87 // pred_check_branch
          %594 = sbr.rel (%p592) target = $region100
        $region99: #{tpu_custom_call.1} parent=87 // pred_region
          %595 = dma.done [#allocation9], 16
        $region100: #{tpu_custom_call.1} parent=87 // pred_fallthru
          _
        // Predicated region
        $region101: #{tpu_custom_call.1} parent=87 // pred_check
          %p596 = pneg %p360
        $region102: #{tpu_custom_call.1} parent=87 // pred_check_branch
          %598 = sbr.rel (%p596) target = $region104
        $region103: #{tpu_custom_call.1} parent=87 // pred_region
          %599 = dma.done [#allocation12], 16
        $region104: #{tpu_custom_call.1} parent=87 // pred_fallthru
          _
        // Predicated region
        $region105: #{tpu_custom_call.1} parent=87 // pred_check
          %p600 = pneg %p381
        $region106: #{tpu_custom_call.1} parent=87 // pred_check_branch
          %602 = sbr.rel (%p600) target = $region108
        $region107: #{tpu_custom_call.1} parent=87 // pred_region
          %603 = dma.done [#allocation12], 16
        $region108: #{tpu_custom_call.1} parent=87 // pred_fallthru
          _
        %604 = sfence
        %p605 = scmp.lt.s32.totalorder %s35, 1
        %s606 = scalar_select %p605, %s35, 1
        %s607 = smul.addr %s606, 8
        %s608 = scalar_lea.vmem %s0, %s607
        %p609 = pneg %p56
        %p610 = pneg %p53
        %p611 = scmp.lt.s32.totalorder %s35, 1
        %s612 = scalar_select %p611, %s35, 1
        %s613 = smul.addr %s612, 8
        %s614 = scalar_lea.vmem %s1, %s613
        %p615 = pneg %p82
        %p616 = pneg %p79
        %p617 = pneg %p103
        %p618 = pneg %p100
        %p619 = scmp.lt.s32.totalorder %s35, 1
        %s620 = scalar_select %p619, %s35, 1
        %s621 = smul.addr %s620, 2
        %s622 = smul.addr %s621, 8
        %s623 = scalar_lea.vmem %s3, %s622
        %p624 = pneg %p129
        %p625 = pneg %p126
        %p626 = pneg %p150
        %p627 = pneg %p147
        %p628 = pneg %p171
        %p629 = pneg %p168
        %p630 = pneg %p192
        %p631 = pneg %p189
        %p632 = pneg %p213
        %p633 = pneg %p210
        %p634 = pneg %p234
        %p635 = pneg %p231
        %p636 = pneg %p255
        %p637 = pneg %p252
        %p638 = pneg %p276
        %p639 = pneg %p273
        %p640 = pneg %p297
        %p641 = pneg %p294
        %p642 = pneg %p318
        %p643 = pneg %p315
        %p644 = pneg %p339
        %p645 = pneg %p336
        %p646 = pneg %p360
        %p647 = pneg %p357
        %p648 = pneg %p381
        %p649 = pneg %p378
        %p650 = pneg %p402
        %p651 = pneg %p399
        %p652 = pneg %p428
        %p653 = pneg %p425
        %p654 = scmp.lt.s32.totalorder %s35, 1
        %s655 = scalar_select %p654, %s35, 1
        %s656 = smul.addr %s655, 2
        %s657 = smul.addr %s656, 8
        %s658 = scalar_lea.vmem %s17, %s657
        %p659 = pneg %p454
        %p660 = pneg %p451
        %p661 = scmp.lt.s32.totalorder %s35, 1
        %s662 = scalar_select %p661, %s35, 1
        %s663 = smul.addr %s662, 2
        %s664 = smul.addr %s663, 8
        %s665 = scalar_lea.vmem %s18, %s664
        %p666 = scmp.lt.s32.totalorder %s35, 1
        %s667 = scalar_select %p666, %s35, 1
        %s668 = smul.addr %s667, 8
        %s669 = scalar_lea.vmem %s0, %s668
        %p670 = scmp.lt.s32.totalorder %s35, 1
        %s671 = scalar_select %p670, %s35, 1
        %s672 = smul.addr %s671, 8
        %s673 = scalar_lea.vmem %s1, %s672
        %p674 = scmp.lt.s32.totalorder %s35, 1
        %s675 = scalar_select %p674, %s35, 1
        %s676 = smul.addr %s675, 2
        %s677 = smul.addr %s676, 8
        %s678 = scalar_lea.vmem %s3, %s677
        %p679 = scmp.lt.s32.totalorder %s35, 1
        %s680 = scalar_select %p679, %s35, 1
        %s681 = smul.addr %s680, 2
        %s682 = smul.addr %s681, 8
        %s683 = scalar_lea.vmem %s17, %s682
        %p684 = scmp.lt.s32.totalorder %s35, 1
        %s685 = scalar_select %p684, %s35, 1
        %s686 = smul.addr %s685, 2
        %s687 = smul.addr %s686, 8
        %s688 = scalar_lea.vmem %s18, %s687
        %v689 = vld [vmem:[%s669] sm:$0xff]
        %v690 = vld [vmem:[%s673] sm:$0xff]
        %v691 = vld [vmem:[%s2] sm:$0x1]
        %v692 = vld [vmem:[%s678] sm:$0xff]
        %v693 = vld [vmem:[%s678 + $0x8] sm:$0x3]
        %695 = vset.pattern.permute.xlu0 0
        %696 = vperm.xlu0 %695, %v689
        %v697 = vpop.permute.xlu0 %696
        %v700 = vlaneseq
        %v701 = vshrl.u32 %v700, 7
        %v702 = vsub.s32 0, %v701
        %v703 = vrot.slane %v691, %v702
        %v705 = vsub.f32 %v697, %v703
        %v706 = vmul.f32 %v705, %v705
        %s707 = sld [smem:[#allocation6]]
        %s708 = smul.f32 %s707, -2.0
        %v709 = vstv %s708
        %v710 = vmul.f32 %v709, 1.442695
        %v711 = vpow.pop %v710
        %s712 = vtos %v711
        %s713 = smul.f32 %s712, 0.5
        %s714 = sld [smem:[#allocation6 + $0x1]]
        %s715 = smul.f32 %s714, -2.0
        %v716 = vstv %s715
        %v717 = vmul.f32 %v716, 1.442695
        %v718 = vpow.pop %v717
        %s719 = vtos %v718
        %s720 = smul.f32 %s719, 0.5
        %v721 = vsub.f32 0.0, %v706
        %v722 = vstv %s713
        %v723 = vmul.f32 %v721, %v722
        %v724 = vmul.f32 %v723, 1.442695
        %v725 = vpow.pop %v724
        %vm726 = vcmask 621568
        %v727 = vsel %vm726, %v725, 0.0
        %v728 = vrot.slane %v727, 4
        %v729 = vadd.f32 %v727, %v728
        %v730 = vrot.slane %v729, 2
        %v731 = vadd.f32 %v729, %v730
        %v732 = vrot.slane %v731, 1
        %v733 = vadd.f32 %v731, %v732
        %v734 = vstv %s720
        %v735 = vmul.f32 %v721, %v734
        %v736 = vmul.f32 %v735, 1.442695
        %v737 = vpow.pop %v736
        %739 = vset.pattern.permute.xlu0 0
        %740 = vperm.xlu0 %739, %v690
        %v741 = vpop.permute.xlu0 %740
        %v743 = vmul.f32 %v737, %v741
        %v744 = vsel %vm726, %v743, 0.0
        %v745 = vrot.slane %v744, 4
        %v746 = vadd.f32 %v744, %v745
        %v747 = vrot.slane %v746, 2
        %v748 = vadd.f32 %v746, %v747
        %v749 = vrot.slane %v748, 1
        %v750 = vadd.f32 %v748, %v749
        %v751 = vadd.f32 %v733, 1e-08
        %v752 = vrcp.pop %v751
        %v753 = vmul.f32 %v750, %v752
        %v754 = vld [vmem:[%s5] sm:$0xff]
        %756 = vset.pattern.permute.xlu0 0
        %757 = vperm.xlu0 %756, %v754
        %v758 = vpop.permute.xlu0 %757
        %v760 = vmul.f32 %v758, %v733
        %761 = vset.pattern.permute.xlu0 1
        %762 = vperm.xlu0 %761, %v754
        %v763 = vpop.permute.xlu0 %762
        %v765 = vmul.f32 %v763, %v753
        %v766 = vadd.f32 %v760, %v765
        %v767 = vld [vmem:[%s6] sm:$0xff]
        %769 = vset.pattern.permute.xlu0 0
        %770 = vperm.xlu0 %769, %v767
        %v771 = vpop.permute.xlu0 %770
        %v773 = vadd.f32 %v766, %v771
        %v774 = vsub.f32 0.0, %v773
        %v775 = vmul.f32 %v774, 1.442695
        %v776 = vpow.pop %v775
        %v777 = vadd.f32 %v776, 1.0
        %v778 = vrcp.pop %v777
        %v779 = vmul.f32 1.0, %v778
        %v780 = vlaneseq
        %v781 = vand.u32 %v780, 127
        %vm782 = vcmp.ge.s32.totalorder %v781, 4
        %vm783 = vcmp.lt.s32.totalorder %v781, 72
        %vm784 = vmand %vm782, %vm783
        %v785 = vsel %vm784, %v779, 0.0
        %vm786 = vcmask 588800
        %787 = vst.msk [vmem:[#allocation2] sm:$0xff] %vm786, %v785
        %789 = vrot.lane.b32.xlu0 %v785, 127
        %v790 = vpop.permute.xlu0 %789
        %792 = vst.msk [vmem:[#allocation2 + $0x8] sm:$0xff] %vm786, %v790
        %793 = vrot.lane.b32.xlu0 %v785, 126
        %v794 = vpop.permute.xlu0 %793
        %796 = vst.msk [vmem:[#allocation2 + $0x10] sm:$0xff] %vm786, %v794
        %797 = vrot.lane.b32.xlu0 %v785, 125
        %v798 = vpop.permute.xlu0 %797
        %800 = vst.msk [vmem:[#allocation2 + $0x18] sm:$0xff] %vm786, %v798
        %801 = vrot.lane.b32.xlu0 %v785, 124
        %v802 = vpop.permute.xlu0 %801
        %804 = vst.msk [vmem:[#allocation2 + $0x20] sm:$0xff] %vm786, %v802
        %v805 = vld [vmem:[%s7] sm:$0xff]
        %v806 = vld [vmem:[%s7 + $0x8] sm:$0xff]
        %v807 = vld [vmem:[#allocation2] sm:$0xff]
        %v808 = vld [vmem:[#allocation2 + $0x8] sm:$0xff]
        %v809 = vld [vmem:[#allocation2 + $0x10] sm:$0xff]
        %v810 = vld [vmem:[#allocation2 + $0x18] sm:$0xff]
        %v811 = vld [vmem:[#allocation2 + $0x20] sm:$0xff]
        %v812 = vld [vmem:[%s8] sm:$0xff]
        %v813 = vld [vmem:[%s8 + $0x8] sm:$0xff]
        %815 = vset.pattern.permute.xlu0 0
        %816 = vperm.xlu0 %815, %v812
        %v817 = vpop.permute.xlu0 %816
        %820 = vset.pattern.permute.xlu0 0
        %821 = vperm.xlu0 %820, %v813
        %v822 = vpop.permute.xlu0 %821
        %vm824 = vcmask 326656
        %v826 = vsel %vm824, %v805, 0
        %v829 = vsel %vm824, %v806, 0
        %831 = vmatprep.subr.mxu0 0.0
        %832 = vmatpush1.msra.mxu0 %v807
        %833 = vmatprep.subr.mxu0 0.0
        %834 = vmatpush1.msra.mxu0 %v808
        %835 = vmatprep.subr.mxu0 0.0
        %836 = vmatpush1.msra.mxu0 %v809
        %837 = vmatprep.subr.mxu0 0.0
        %838 = vmatpush1.msra.mxu0 %v810
        %839 = vmatprep.subr.mxu0 0.0
        %840 = vmatpush1.msra.mxu0 %v811
        %841 = vmatprep.subr.mxu0 0.0
        %842 = vmatpush1.msra.mxu0 0.0
        %843 = vmatprep.subr.mxu0 0.0
        %844 = vmatpush1.msra.mxu0 0.0
        %845 = vmatprep.subr.mxu0 0.0
        %846 = vmatpush1.msra.mxu0 0.0
        %847 = vmatprep.subr.mxu0 0.0
        %848 = vmatpush1.msra.mxu0 0.0
        %849 = vmatprep.subr.mxu0 0.0
        %850 = vmatpush1.msra.mxu0 0.0
        %851 = vmatprep.subr.mxu0 0.0
        %852 = vmatpush1.msra.mxu0 0.0
        %853 = vmatprep.subr.mxu0 0.0
        %854 = vmatpush1.msra.mxu0 0.0
        %855 = vmatprep.subr.mxu0 0.0
        %856 = vmatpush1.msra.mxu0 0.0
        %857 = vmatprep.subr.mxu0 0.0
        %858 = vmatpush1.msra.mxu0 0.0
        %859 = vmatprep.subr.mxu0 0.0
        %860 = vmatpush1.msra.mxu0 0.0
        %861 = vmatprep.subr.mxu0 0.0
        %862 = vmatpush1.msra.mxu0 0.0
        %863 = vmatprep.subr.mxu0 0.0
        %864 = vmatpush1.msra.mxu0 0.0
        %865 = vmatprep.subr.mxu0 0.0
        %866 = vmatpush1.msra.mxu0 0.0
        %867 = vmatprep.subr.mxu0 0.0
        %868 = vmatpush1.msra.mxu0 0.0
        %869 = vmatprep.subr.mxu0 0.0
        %870 = vmatpush1.msra.mxu0 0.0
        %871 = vmatprep.subr.mxu0 0.0
        %872 = vmatpush1.msra.mxu0 0.0
        %873 = vmatprep.subr.mxu0 0.0
        %874 = vmatpush1.msra.mxu0 0.0
        %875 = vmatprep.subr.mxu0 0.0
        %876 = vmatpush1.msra.mxu0 0.0
        %877 = vmatprep.subr.mxu0 0.0
        %878 = vmatpush1.msra.mxu0 0.0
        %879 = vmatprep.subr.mxu0 0.0
        %880 = vmatpush1.msra.mxu0 0.0
        %881 = vmatprep.subr.mxu0 0.0
        %882 = vmatpush1.msra.mxu0 0.0
        %883 = vmatprep.subr.mxu0 0.0
        %884 = vmatpush1.msra.mxu0 0.0
        %885 = vmatprep.subr.mxu0 0.0
        %886 = vmatpush1.msra.mxu0 0.0
        %887 = vmatprep.subr.mxu0 0.0
        %888 = vmatpush1.msra.mxu0 0.0
        %889 = vmatprep.subr.mxu0 0.0
        %890 = vmatpush1.msra.mxu0 0.0
        %891 = vmatprep.subr.mxu0 0.0
        %892 = vmatpush1.msra.mxu0 0.0
        %893 = vmatprep.subr.mxu0 0.0
        %894 = vmatpush1.msra.mxu0 0.0
        %895 = vmatprep.mubr.f32.mxu0 0.0
        %896 = vmatmul.mubr.f32.gmra.mrb[0].mxu0 %v826
        %v897 = vpop.f32.mrb[0].mxu0
        %v898 = vadd.f32 %v817, %v897
        %v899 = vpop.f32.mrb[0].mxu0
        %900 = vmatprep.mubr.f32.mxu0 0.0
        %901 = vmatmul.mubr.f32.gmra.mrb[0].mxu0 %v829
        %v902 = vpop.f32.mrb[0].mxu0
        %v903 = vadd.f32 %v822, %v902
        %v904 = vpop.f32.mrb[0].mxu0
        %905 = vdwg.mxu0
        %v906 = vmax.f32 %v898, 0.0
        %v907 = vmax.f32 %v903, 0.0
        %vm908 = vcmp.ge.s32.totalorder %v781, 2
        %vm909 = vcmp.lt.s32.totalorder %v781, 70
        %vm910 = vmand %vm908, %vm909
        %v911 = vsel %vm910, %v906, 0.0
        %v912 = vsel %vm910, %v907, 0.0
        %vm913 = vcmask 556032
        %914 = vst.msk [vmem:[#allocation3] sm:$0xff] %vm913, %v911
        %915 = vst.msk [vmem:[#allocation3 + $0x8] sm:$0xff] %vm913, %v912
        %918 = vrot.lane.b32.xlu0 %v911, 127
        %v919 = vpop.permute.xlu0 %918
        %920 = vrot.lane.b32.xlu0 %v912, 127
        %v921 = vpop.permute.xlu0 %920
        %924 = vst.msk [vmem:[#allocation3 + $0x10] sm:$0xff] %vm913, %v919
        %925 = vst.msk [vmem:[#allocation3 + $0x18] sm:$0xff] %vm913, %v921
        %926 = vrot.lane.b32.xlu0 %v911, 126
        %v927 = vpop.permute.xlu0 %926
        %928 = vrot.lane.b32.xlu0 %v912, 126
        %v929 = vpop.permute.xlu0 %928
        %932 = vst.msk [vmem:[#allocation3 + $0x20] sm:$0xff] %vm913, %v927
        %933 = vst.msk [vmem:[#allocation3 + $0x28] sm:$0xff] %vm913, %v929
        %934 = vrot.lane.b32.xlu0 %v911, 125
        %v935 = vpop.permute.xlu0 %934
        %936 = vrot.lane.b32.xlu0 %v912, 125
        %v937 = vpop.permute.xlu0 %936
        %940 = vst.msk [vmem:[#allocation3 + $0x30] sm:$0xff] %vm913, %v935
        %941 = vst.msk [vmem:[#allocation3 + $0x38] sm:$0xff] %vm913, %v937
        %942 = vrot.lane.b32.xlu0 %v911, 124
        %v943 = vpop.permute.xlu0 %942
        %944 = vrot.lane.b32.xlu0 %v912, 124
        %v945 = vpop.permute.xlu0 %944
        %948 = vst.msk [vmem:[#allocation3 + $0x40] sm:$0xff] %vm913, %v943
        %949 = vst.msk [vmem:[#allocation3 + $0x48] sm:$0xff] %vm913, %v945
        %v950 = vld [vmem:[%s9] sm:$0xff]
        %v951 = vld [vmem:[#allocation3] sm:$0xff]
        %v952 = vld [vmem:[#allocation3 + $0x8] sm:$0xff]
        %v953 = vld [vmem:[#allocation3 + $0x10] sm:$0xff]
        %v954 = vld [vmem:[#allocation3 + $0x18] sm:$0xff]
        %v955 = vld [vmem:[#allocation3 + $0x20] sm:$0xff]
        %v956 = vld [vmem:[#allocation3 + $0x28] sm:$0xff]
        %v957 = vld [vmem:[#allocation3 + $0x30] sm:$0xff]
        %v958 = vld [vmem:[#allocation3 + $0x38] sm:$0xff]
        %v959 = vld [vmem:[#allocation3 + $0x40] sm:$0xff]
        %v960 = vld [vmem:[#allocation3 + $0x48] sm:$0xff]
        %v961 = vld [vmem:[%s10] sm:$0xff]
        %963 = vset.pattern.permute.xlu0 0
        %964 = vperm.xlu0 %963, %v961
        %v965 = vpop.permute.xlu0 %964
        %vm967 = vcmask 654336
        %v969 = vsel %vm967, %v950, 0
        %971 = vmatprep.subr.mxu0 0.0
        %972 = vmatpush1.msra.mxu0 %v951
        %973 = vmatprep.subr.mxu0 0.0
        %974 = vmatpush1.msra.mxu0 %v952
        %975 = vmatprep.subr.mxu0 0.0
        %976 = vmatpush1.msra.mxu0 %v953
        %977 = vmatprep.subr.mxu0 0.0
        %978 = vmatpush1.msra.mxu0 %v954
        %979 = vmatprep.subr.mxu0 0.0
        %980 = vmatpush1.msra.mxu0 %v955
        %981 = vmatprep.subr.mxu0 0.0
        %982 = vmatpush1.msra.mxu0 %v956
        %983 = vmatprep.subr.mxu0 0.0
        %984 = vmatpush1.msra.mxu0 %v957
        %985 = vmatprep.subr.mxu0 0.0
        %986 = vmatpush1.msra.mxu0 %v958
        %987 = vmatprep.subr.mxu0 0.0
        %988 = vmatpush1.msra.mxu0 %v959
        %989 = vmatprep.subr.mxu0 0.0
        %990 = vmatpush1.msra.mxu0 %v960
        %991 = vmatprep.subr.mxu0 0.0
        %992 = vmatpush1.msra.mxu0 0.0
        %993 = vmatprep.subr.mxu0 0.0
        %994 = vmatpush1.msra.mxu0 0.0
        %995 = vmatprep.subr.mxu0 0.0
        %996 = vmatpush1.msra.mxu0 0.0
        %997 = vmatprep.subr.mxu0 0.0
        %998 = vmatpush1.msra.mxu0 0.0
        %999 = vmatprep.subr.mxu0 0.0
        %1000 = vmatpush1.msra.mxu0 0.0
        %1001 = vmatprep.subr.mxu0 0.0
        %1002 = vmatpush1.msra.mxu0 0.0
        %1003 = vmatprep.subr.mxu0 0.0
        %1004 = vmatpush1.msra.mxu0 0.0
        %1005 = vmatprep.subr.mxu0 0.0
        %1006 = vmatpush1.msra.mxu0 0.0
        %1007 = vmatprep.subr.mxu0 0.0
        %1008 = vmatpush1.msra.mxu0 0.0
        %1009 = vmatprep.subr.mxu0 0.0
        %1010 = vmatpush1.msra.mxu0 0.0
        %1011 = vmatprep.subr.mxu0 0.0
        %1012 = vmatpush1.msra.mxu0 0.0
        %1013 = vmatprep.subr.mxu0 0.0
        %1014 = vmatpush1.msra.mxu0 0.0
        %1015 = vmatprep.subr.mxu0 0.0
        %1016 = vmatpush1.msra.mxu0 0.0
        %1017 = vmatprep.subr.mxu0 0.0
        %1018 = vmatpush1.msra.mxu0 0.0
        %1019 = vmatprep.subr.mxu0 0.0
        %1020 = vmatpush1.msra.mxu0 0.0
        %1021 = vmatprep.subr.mxu0 0.0
        %1022 = vmatpush1.msra.mxu0 0.0
        %1023 = vmatprep.subr.mxu0 0.0
        %1024 = vmatpush1.msra.mxu0 0.0
        %1025 = vmatprep.subr.mxu0 0.0
        %1026 = vmatpush1.msra.mxu0 0.0
        %1027 = vmatprep.subr.mxu0 0.0
        %1028 = vmatpush1.msra.mxu0 0.0
        %1029 = vmatprep.subr.mxu0 0.0
        %1030 = vmatpush1.msra.mxu0 0.0
        %1031 = vmatprep.subr.mxu0 0.0
        %1032 = vmatpush1.msra.mxu0 0.0
        %1033 = vmatprep.subr.mxu0 0.0
        %1034 = vmatpush1.msra.mxu0 0.0
        %1035 = vmatprep.mubr.f32.mxu0 0.0
        %1036 = vmatmul.mubr.f32.gmra.mrb[0].mxu0 %v969
        %v1037 = vpop.f32.mrb[0].mxu0
        %v1038 = vadd.f32 %v965, %v1037
        %v1039 = vpop.f32.mrb[0].mxu0
        %1040 = vdwg.mxu0
        %1042 = vset.pattern.permute.xlu0 0
        %1043 = vperm.xlu0 %1042, %v692
        %v1044 = vpop.permute.xlu0 %1043
        %1047 = vset.pattern.permute.xlu0 0
        %1048 = vperm.xlu0 %1047, %v693
        %v1049 = vpop.permute.xlu0 %1048
        %v1051 = vsub.f32 %v1044, %v703
        %v1052 = vsub.f32 %v1049, %v703
        %v1053 = vmul.f32 %v1051, %v1051
        %v1054 = vmul.f32 %v1052, %v1052
        %s1055 = sld [smem:[#allocation8]]
        %s1056 = smul.f32 %s1055, -2.0
        %v1057 = vstv %s1056
        %v1058 = vmul.f32 %v1057, 1.442695
        %v1059 = vpow.pop %v1058
        %s1060 = vtos %v1059
        %s1061 = smul.f32 %s1060, 0.5
        %s1062 = sld [smem:[#allocation11]]
        %s1063 = smul.f32 %s1062, -2.0
        %v1064 = vstv %s1063
        %v1065 = vmul.f32 %v1064, 1.442695
        %v1066 = vpow.pop %v1065
        %s1067 = vtos %v1066
        %s1068 = smul.f32 %s1067, 0.5
        %v1069 = vsub.f32 0.0, %v1053
        %v1070 = vsub.f32 0.0, %v1054
        %v1071 = vstv %s1061
        %v1072 = vmul.f32 %v1069, %v1071
        %v1073 = vmul.f32 %v1070, %v1071
        %v1074 = vmul.f32 %v1072, 1.442695
        %v1075 = vpow.pop %v1074
        %v1076 = vmul.f32 %v1073, 1.442695
        %v1077 = vpow.pop %v1076
        %s1078 = sld [smem:[#allocation10]]
        %v1079 = vstv %s1078
        %v1080 = vmul.f32 %v1079, %v1038
        %v1081 = vlaneseq
        %v1082 = vshrl.u32 %v1081, 7
        %v1083 = vsub.s32 0, %v1082
        %v1084 = vrot.slane %v1080, %v1083
        %1086 = vrot.lane.b32.xlu0 %v1084, 4
        %v1087 = vpop.permute.xlu0 %1086
        %v1089 = vmul.f32 %v1075, %v1087
        %v1090 = vmul.f32 %v1077, %v1087
        %v1091 = vadd.f32 %v1089, 0.0
        %v1092 = vadd.f32 %v1090, 0.0
        %v1093 = vstv %s1068
        %v1094 = vmul.f32 %v1069, %v1093
        %v1095 = vmul.f32 %v1070, %v1093
        %v1096 = vmul.f32 %v1094, 1.442695
        %v1097 = vpow.pop %v1096
        %v1098 = vmul.f32 %v1095, 1.442695
        %v1099 = vpow.pop %v1098
        %s1100 = sld [smem:[#allocation13]]
        %v1101 = vstv %s1100
        %v1102 = vmul.f32 %v1101, %v1038
        %v1103 = vlaneseq
        %v1104 = vshrl.u32 %v1103, 7
        %v1105 = vsub.s32 0, %v1104
        %v1106 = vrot.slane %v1102, %v1105
        %1108 = vrot.lane.b32.xlu0 %v1106, 4
        %v1109 = vpop.permute.xlu0 %1108
        %v1111 = vmul.f32 %v1097, %v1109
        %v1112 = vmul.f32 %v1099, %v1109
        %v1113 = vadd.f32 %v1111, 0.0
        %v1114 = vadd.f32 %v1112, 0.0
        %s1115 = sld [smem:[#allocation8 + $0x1]]
        %s1116 = smul.f32 %s1115, -2.0
        %v1117 = vstv %s1116
        %v1118 = vmul.f32 %v1117, 1.442695
        %v1119 = vpow.pop %v1118
        %s1120 = vtos %v1119
        %s1121 = smul.f32 %s1120, 0.5
        %s1122 = sld [smem:[#allocation11 + $0x1]]
        %s1123 = smul.f32 %s1122, -2.0
        %v1124 = vstv %s1123
        %v1125 = vmul.f32 %v1124, 1.442695
        %v1126 = vpow.pop %v1125
        %s1127 = vtos %v1126
        %s1128 = smul.f32 %s1127, 0.5
        %v1129 = vstv %s1121
        %v1130 = vmul.f32 %v1069, %v1129
        %v1131 = vmul.f32 %v1070, %v1129
        %v1132 = vmul.f32 %v1130, 1.442695
        %v1133 = vpow.pop %v1132
        %v1134 = vmul.f32 %v1131, 1.442695
        %v1135 = vpow.pop %v1134
        %s1136 = sld [smem:[#allocation10 + $0x1]]
        %v1137 = vstv %s1136
        %v1138 = vmul.f32 %v1137, %v1038
        %v1139 = vlaneseq
        %v1140 = vshrl.u32 %v1139, 7
        %v1141 = vsub.s32 1, %v1140
        %v1142 = vrot.slane %v1138, %v1141
        %1144 = vrot.lane.b32.xlu0 %v1142, 4
        %v1145 = vpop.permute.xlu0 %1144
        %v1147 = vmul.f32 %v1133, %v1145
        %v1148 = vmul.f32 %v1135, %v1145
        %v1149 = vadd.f32 %v1091, %v1147
        %v1150 = vadd.f32 %v1092, %v1148
        %v1151 = vstv %s1128
        %v1152 = vmul.f32 %v1069, %v1151
        %v1153 = vmul.f32 %v1070, %v1151
        %v1154 = vmul.f32 %v1152, 1.442695
        %v1155 = vpow.pop %v1154
        %v1156 = vmul.f32 %v1153, 1.442695
        %v1157 = vpow.pop %v1156
        %s1158 = sld [smem:[#allocation13 + $0x1]]
        %v1159 = vstv %s1158
        %v1160 = vmul.f32 %v1159, %v1038
        %v1161 = vlaneseq
        %v1162 = vshrl.u32 %v1161, 7
        %v1163 = vsub.s32 1, %v1162
        %v1164 = vrot.slane %v1160, %v1163
        %1166 = vrot.lane.b32.xlu0 %v1164, 4
        %v1167 = vpop.permute.xlu0 %1166
        %v1169 = vmul.f32 %v1155, %v1167
        %v1170 = vmul.f32 %v1157, %v1167
        %v1171 = vadd.f32 %v1113, %v1169
        %v1172 = vadd.f32 %v1114, %v1170
        %s1173 = sld [smem:[#allocation8 + $0x2]]
        %s1174 = smul.f32 %s1173, -2.0
        %v1175 = vstv %s1174
        %v1176 = vmul.f32 %v1175, 1.442695
        %v1177 = vpow.pop %v1176
        %s1178 = vtos %v1177
        %s1179 = smul.f32 %s1178, 0.5
        %s1180 = sld [smem:[#allocation11 + $0x2]]
        %s1181 = smul.f32 %s1180, -2.0
        %v1182 = vstv %s1181
        %v1183 = vmul.f32 %v1182, 1.442695
        %v1184 = vpow.pop %v1183
        %s1185 = vtos %v1184
        %s1186 = smul.f32 %s1185, 0.5
        %v1187 = vstv %s1179
        %v1188 = vmul.f32 %v1069, %v1187
        %v1189 = vmul.f32 %v1070, %v1187
        %v1190 = vmul.f32 %v1188, 1.442695
        %v1191 = vpow.pop %v1190
        %v1192 = vmul.f32 %v1189, 1.442695
        %v1193 = vpow.pop %v1192
        %s1194 = sld [smem:[#allocation10 + $0x2]]
        %v1195 = vstv %s1194
        %v1196 = vmul.f32 %v1195, %v1038
        %v1197 = vlaneseq
        %v1198 = vshrl.u32 %v1197, 7
        %v1199 = vsub.s32 2, %v1198
        %v1200 = vrot.slane %v1196, %v1199
        %1202 = vrot.lane.b32.xlu0 %v1200, 4
        %v1203 = vpop.permute.xlu0 %1202
        %v1205 = vmul.f32 %v1191, %v1203
        %v1206 = vmul.f32 %v1193, %v1203
        %v1207 = vadd.f32 %v1149, %v1205
        %v1208 = vadd.f32 %v1150, %v1206
        %v1209 = vstv %s1186
        %v1210 = vmul.f32 %v1069, %v1209
        %v1211 = vmul.f32 %v1070, %v1209
        %v1212 = vmul.f32 %v1210, 1.442695
        %v1213 = vpow.pop %v1212
        %v1214 = vmul.f32 %v1211, 1.442695
        %v1215 = vpow.pop %v1214
        %s1216 = sld [smem:[#allocation13 + $0x2]]
        %v1217 = vstv %s1216
        %v1218 = vmul.f32 %v1217, %v1038
        %v1219 = vlaneseq
        %v1220 = vshrl.u32 %v1219, 7
        %v1221 = vsub.s32 2, %v1220
        %v1222 = vrot.slane %v1218, %v1221
        %1224 = vrot.lane.b32.xlu0 %v1222, 4
        %v1225 = vpop.permute.xlu0 %1224
        %v1227 = vmul.f32 %v1213, %v1225
        %v1228 = vmul.f32 %v1215, %v1225
        %v1229 = vadd.f32 %v1171, %v1227
        %v1230 = vadd.f32 %v1172, %v1228
        %s1231 = sld [smem:[#allocation8 + $0x3]]
        %s1232 = smul.f32 %s1231, -2.0
        %v1233 = vstv %s1232
        %v1234 = vmul.f32 %v1233, 1.442695
        %v1235 = vpow.pop %v1234
        %s1236 = vtos %v1235
        %s1237 = smul.f32 %s1236, 0.5
        %s1238 = sld [smem:[#allocation11 + $0x3]]
        %s1239 = smul.f32 %s1238, -2.0
        %v1240 = vstv %s1239
        %v1241 = vmul.f32 %v1240, 1.442695
        %v1242 = vpow.pop %v1241
        %s1243 = vtos %v1242
        %s1244 = smul.f32 %s1243, 0.5
        %v1245 = vstv %s1237
        %v1246 = vmul.f32 %v1069, %v1245
        %v1247 = vmul.f32 %v1070, %v1245
        %v1248 = vmul.f32 %v1246, 1.442695
        %v1249 = vpow.pop %v1248
        %v1250 = vmul.f32 %v1247, 1.442695
        %v1251 = vpow.pop %v1250
        %s1252 = sld [smem:[#allocation10 + $0x3]]
        %v1253 = vstv %s1252
        %v1254 = vmul.f32 %v1253, %v1038
        %v1255 = vlaneseq
        %v1256 = vshrl.u32 %v1255, 7
        %v1257 = vsub.s32 3, %v1256
        %v1258 = vrot.slane %v1254, %v1257
        %1260 = vrot.lane.b32.xlu0 %v1258, 4
        %v1261 = vpop.permute.xlu0 %1260
        %v1263 = vmul.f32 %v1249, %v1261
        %v1264 = vmul.f32 %v1251, %v1261
        %v1265 = vadd.f32 %v1207, %v1263
        %v1266 = vadd.f32 %v1208, %v1264
        %v1267 = vstv %s1244
        %v1268 = vmul.f32 %v1069, %v1267
        %v1269 = vmul.f32 %v1070, %v1267
        %v1270 = vmul.f32 %v1268, 1.442695
        %v1271 = vpow.pop %v1270
        %v1272 = vmul.f32 %v1269, 1.442695
        %v1273 = vpow.pop %v1272
        %s1274 = sld [smem:[#allocation13 + $0x3]]
        %v1275 = vstv %s1274
        %v1276 = vmul.f32 %v1275, %v1038
        %v1277 = vlaneseq
        %v1278 = vshrl.u32 %v1277, 7
        %v1279 = vsub.s32 3, %v1278
        %v1280 = vrot.slane %v1276, %v1279
        %1282 = vrot.lane.b32.xlu0 %v1280, 4
        %v1283 = vpop.permute.xlu0 %1282
        %v1285 = vmul.f32 %v1271, %v1283
        %v1286 = vmul.f32 %v1273, %v1283
        %v1287 = vadd.f32 %v1229, %v1285
        %v1288 = vadd.f32 %v1230, %v1286
        %s1289 = sld [smem:[#allocation8 + $0x4]]
        %s1290 = smul.f32 %s1289, -2.0
        %v1291 = vstv %s1290
        %v1292 = vmul.f32 %v1291, 1.442695
        %v1293 = vpow.pop %v1292
        %s1294 = vtos %v1293
        %s1295 = smul.f32 %s1294, 0.5
        %s1296 = sld [smem:[#allocation11 + $0x4]]
        %s1297 = smul.f32 %s1296, -2.0
        %v1298 = vstv %s1297
        %v1299 = vmul.f32 %v1298, 1.442695
        %v1300 = vpow.pop %v1299
        %s1301 = vtos %v1300
        %s1302 = smul.f32 %s1301, 0.5
        %v1303 = vstv %s1295
        %v1304 = vmul.f32 %v1069, %v1303
        %v1305 = vmul.f32 %v1070, %v1303
        %v1306 = vmul.f32 %v1304, 1.442695
        %v1307 = vpow.pop %v1306
        %v1308 = vmul.f32 %v1305, 1.442695
        %v1309 = vpow.pop %v1308
        %s1310 = sld [smem:[#allocation10 + $0x4]]
        %v1311 = vstv %s1310
        %v1312 = vmul.f32 %v1311, %v1038
        %v1313 = vlaneseq
        %v1314 = vshrl.u32 %v1313, 7
        %v1315 = vsub.s32 4, %v1314
        %v1316 = vrot.slane %v1312, %v1315
        %1318 = vrot.lane.b32.xlu0 %v1316, 4
        %v1319 = vpop.permute.xlu0 %1318
        %v1321 = vmul.f32 %v1307, %v1319
        %v1322 = vmul.f32 %v1309, %v1319
        %v1323 = vadd.f32 %v1265, %v1321
        %v1324 = vadd.f32 %v1266, %v1322
        %v1325 = vstv %s1302
        %v1326 = vmul.f32 %v1069, %v1325
        %v1327 = vmul.f32 %v1070, %v1325
        %v1328 = vmul.f32 %v1326, 1.442695
        %v1329 = vpow.pop %v1328
        %v1330 = vmul.f32 %v1327, 1.442695
        %v1331 = vpow.pop %v1330
        %s1332 = sld [smem:[#allocation13 + $0x4]]
        %v1333 = vstv %s1332
        %v1334 = vmul.f32 %v1333, %v1038
        %v1335 = vlaneseq
        %v1336 = vshrl.u32 %v1335, 7
        %v1337 = vsub.s32 4, %v1336
        %v1338 = vrot.slane %v1334, %v1337
        %1340 = vrot.lane.b32.xlu0 %v1338, 4
        %v1341 = vpop.permute.xlu0 %1340
        %v1343 = vmul.f32 %v1329, %v1341
        %v1344 = vmul.f32 %v1331, %v1341
        %v1345 = vadd.f32 %v1287, %v1343
        %v1346 = vadd.f32 %v1288, %v1344
        %s1347 = sld [smem:[#allocation8 + $0x5]]
        %s1348 = smul.f32 %s1347, -2.0
        %v1349 = vstv %s1348
        %v1350 = vmul.f32 %v1349, 1.442695
        %v1351 = vpow.pop %v1350
        %s1352 = vtos %v1351
        %s1353 = smul.f32 %s1352, 0.5
        %s1354 = sld [smem:[#allocation11 + $0x5]]
        %s1355 = smul.f32 %s1354, -2.0
        %v1356 = vstv %s1355
        %v1357 = vmul.f32 %v1356, 1.442695
        %v1358 = vpow.pop %v1357
        %s1359 = vtos %v1358
        %s1360 = smul.f32 %s1359, 0.5
        %v1361 = vstv %s1353
        %v1362 = vmul.f32 %v1069, %v1361
        %v1363 = vmul.f32 %v1070, %v1361
        %v1364 = vmul.f32 %v1362, 1.442695
        %v1365 = vpow.pop %v1364
        %v1366 = vmul.f32 %v1363, 1.442695
        %v1367 = vpow.pop %v1366
        %s1368 = sld [smem:[#allocation10 + $0x5]]
        %v1369 = vstv %s1368
        %v1370 = vmul.f32 %v1369, %v1038
        %v1371 = vlaneseq
        %v1372 = vshrl.u32 %v1371, 7
        %v1373 = vsub.s32 5, %v1372
        %v1374 = vrot.slane %v1370, %v1373
        %1376 = vrot.lane.b32.xlu0 %v1374, 4
        %v1377 = vpop.permute.xlu0 %1376
        %v1379 = vmul.f32 %v1365, %v1377
        %v1380 = vmul.f32 %v1367, %v1377
        %v1381 = vadd.f32 %v1323, %v1379
        %v1382 = vadd.f32 %v1324, %v1380
        %v1383 = vstv %s1360
        %v1384 = vmul.f32 %v1069, %v1383
        %v1385 = vmul.f32 %v1070, %v1383
        %v1386 = vmul.f32 %v1384, 1.442695
        %v1387 = vpow.pop %v1386
        %v1388 = vmul.f32 %v1385, 1.442695
        %v1389 = vpow.pop %v1388
        %s1390 = sld [smem:[#allocation13 + $0x5]]
        %v1391 = vstv %s1390
        %v1392 = vmul.f32 %v1391, %v1038
        %v1393 = vlaneseq
        %v1394 = vshrl.u32 %v1393, 7
        %v1395 = vsub.s32 5, %v1394
        %v1396 = vrot.slane %v1392, %v1395
        %1398 = vrot.lane.b32.xlu0 %v1396, 4
        %v1399 = vpop.permute.xlu0 %1398
        %v1401 = vmul.f32 %v1387, %v1399
        %v1402 = vmul.f32 %v1389, %v1399
        %v1403 = vadd.f32 %v1345, %v1401
        %v1404 = vadd.f32 %v1346, %v1402
        %s1405 = sld [smem:[#allocation8 + $0x6]]
        %s1406 = smul.f32 %s1405, -2.0
        %v1407 = vstv %s1406
        %v1408 = vmul.f32 %v1407, 1.442695
        %v1409 = vpow.pop %v1408
        %s1410 = vtos %v1409
        %s1411 = smul.f32 %s1410, 0.5
        %s1412 = sld [smem:[#allocation11 + $0x6]]
        %s1413 = smul.f32 %s1412, -2.0
        %v1414 = vstv %s1413
        %v1415 = vmul.f32 %v1414, 1.442695
        %v1416 = vpow.pop %v1415
        %s1417 = vtos %v1416
        %s1418 = smul.f32 %s1417, 0.5
        %v1419 = vstv %s1411
        %v1420 = vmul.f32 %v1069, %v1419
        %v1421 = vmul.f32 %v1070, %v1419
        %v1422 = vmul.f32 %v1420, 1.442695
        %v1423 = vpow.pop %v1422
        %v1424 = vmul.f32 %v1421, 1.442695
        %v1425 = vpow.pop %v1424
        %s1426 = sld [smem:[#allocation10 + $0x6]]
        %v1427 = vstv %s1426
        %v1428 = vmul.f32 %v1427, %v1038
        %v1429 = vlaneseq
        %v1430 = vshrl.u32 %v1429, 7
        %v1431 = vsub.s32 6, %v1430
        %v1432 = vrot.slane %v1428, %v1431
        %1434 = vrot.lane.b32.xlu0 %v1432, 4
        %v1435 = vpop.permute.xlu0 %1434
        %v1437 = vmul.f32 %v1423, %v1435
        %v1438 = vmul.f32 %v1425, %v1435
        %v1439 = vadd.f32 %v1381, %v1437
        %v1440 = vadd.f32 %v1382, %v1438
        %v1441 = vstv %s1418
        %v1442 = vmul.f32 %v1069, %v1441
        %v1443 = vmul.f32 %v1070, %v1441
        %v1444 = vmul.f32 %v1442, 1.442695
        %v1445 = vpow.pop %v1444
        %v1446 = vmul.f32 %v1443, 1.442695
        %v1447 = vpow.pop %v1446
        %s1448 = sld [smem:[#allocation13 + $0x6]]
        %v1449 = vstv %s1448
        %v1450 = vmul.f32 %v1449, %v1038
        %v1451 = vlaneseq
        %v1452 = vshrl.u32 %v1451, 7
        %v1453 = vsub.s32 6, %v1452
        %v1454 = vrot.slane %v1450, %v1453
        %1456 = vrot.lane.b32.xlu0 %v1454, 4
        %v1457 = vpop.permute.xlu0 %1456
        %v1459 = vmul.f32 %v1445, %v1457
        %v1460 = vmul.f32 %v1447, %v1457
        %v1461 = vadd.f32 %v1403, %v1459
        %v1462 = vadd.f32 %v1404, %v1460
        %s1463 = sld [smem:[#allocation8 + $0x7]]
        %s1464 = smul.f32 %s1463, -2.0
        %v1465 = vstv %s1464
        %v1466 = vmul.f32 %v1465, 1.442695
        %v1467 = vpow.pop %v1466
        %s1468 = vtos %v1467
        %s1469 = smul.f32 %s1468, 0.5
        %s1470 = sld [smem:[#allocation11 + $0x7]]
        %s1471 = smul.f32 %s1470, -2.0
        %v1472 = vstv %s1471
        %v1473 = vmul.f32 %v1472, 1.442695
        %v1474 = vpow.pop %v1473
        %s1475 = vtos %v1474
        %s1476 = smul.f32 %s1475, 0.5
        %v1477 = vstv %s1469
        %v1478 = vmul.f32 %v1069, %v1477
        %v1479 = vmul.f32 %v1070, %v1477
        %v1480 = vmul.f32 %v1478, 1.442695
        %v1481 = vpow.pop %v1480
        %v1482 = vmul.f32 %v1479, 1.442695
        %v1483 = vpow.pop %v1482
        %s1484 = sld [smem:[#allocation10 + $0x7]]
        %v1485 = vstv %s1484
        %v1486 = vmul.f32 %v1485, %v1038
        %v1487 = vlaneseq
        %v1488 = vshrl.u32 %v1487, 7
        %v1489 = vsub.s32 7, %v1488
        %v1490 = vrot.slane %v1486, %v1489
        %1492 = vrot.lane.b32.xlu0 %v1490, 4
        %v1493 = vpop.permute.xlu0 %1492
        %v1495 = vmul.f32 %v1481, %v1493
        %v1496 = vmul.f32 %v1483, %v1493
        %v1497 = vadd.f32 %v1439, %v1495
        %v1498 = vadd.f32 %v1440, %v1496
        %v1499 = vstv %s1476
        %v1500 = vmul.f32 %v1069, %v1499
        %v1501 = vmul.f32 %v1070, %v1499
        %v1502 = vmul.f32 %v1500, 1.442695
        %v1503 = vpow.pop %v1502
        %v1504 = vmul.f32 %v1501, 1.442695
        %v1505 = vpow.pop %v1504
        %s1506 = sld [smem:[#allocation13 + $0x7]]
        %v1507 = vstv %s1506
        %v1508 = vmul.f32 %v1507, %v1038
        %v1509 = vlaneseq
        %v1510 = vshrl.u32 %v1509, 7
        %v1511 = vsub.s32 7, %v1510
        %v1512 = vrot.slane %v1508, %v1511
        %1514 = vrot.lane.b32.xlu0 %v1512, 4
        %v1515 = vpop.permute.xlu0 %1514
        %v1517 = vmul.f32 %v1503, %v1515
        %v1518 = vmul.f32 %v1505, %v1515
        %v1519 = vadd.f32 %v1461, %v1517
        %v1520 = vadd.f32 %v1462, %v1518
        %1523 = vrot.lane.b32.xlu0 %v1497, 124
        %v1524 = vpop.permute.xlu0 %1523
        %1525 = vrot.lane.b32.xlu0 %v1498, 124
        %v1526 = vpop.permute.xlu0 %1525
        %v1529 = vsel %vm913, %v1524, 0.0
        %1530 = vadd.xlane.f32.xlu0 %v1529
        %v1531 = vpop.xlane.xlu0 %1530
        %vm1532 = vcmask 549888
        %v1533 = vsel %vm1532, %v1526, 0.0
        %1534 = vadd.xlane.f32.xlu0 %v1533
        %v1535 = vpop.xlane.xlu0 %1534
        %s1536 = sld [smem:[#allocation4]]
        %v1537 = vstv %s1536
        %v1538 = vadd.f32 %v1531, %v1537
        %v1539 = vadd.f32 %v1535, %v1537
        %1542 = vrot.lane.b32.xlu0 %v1519, 124
        %v1543 = vpop.permute.xlu0 %1542
        %1544 = vrot.lane.b32.xlu0 %v1520, 124
        %v1545 = vpop.permute.xlu0 %1544
        %v1548 = vsel %vm913, %v1543, 0.0
        %1549 = vadd.xlane.f32.xlu0 %v1548
        %v1550 = vpop.xlane.xlu0 %1549
        %v1551 = vsel %vm1532, %v1545, 0.0
        %1552 = vadd.xlane.f32.xlu0 %v1551
        %v1553 = vpop.xlane.xlu0 %1552
        %s1554 = sld [smem:[#allocation5]]
        %v1555 = vstv %s1554
        %v1556 = vadd.f32 %v1550, %v1555
        %v1557 = vadd.f32 %v1553, %v1555
        %v1558 = vmax.f32 %v1556, 0.0
        %v1559 = vmax.f32 %v1557, 0.0
        %v1560 = vand.u32 2147483647, %v1556
        %v1561 = vand.u32 2147483647, %v1557
        %v1562 = vsub.f32 0.0, %v1560
        %v1563 = vsub.f32 0.0, %v1561
        %v1564 = vmul.f32 %v1562, 1.442695
        %v1565 = vpow.pop %v1564
        %v1566 = vmul.f32 %v1563, 1.442695
        %v1567 = vpow.pop %v1566
        %v1568 = vadd.f32 %v1565, 1.0
        %v1569 = vadd.f32 %v1567, 1.0
        %v1570 = vlog2.pop %v1568
        %v1571 = vmul.f32 %v1570, 0.6931472
        %v1572 = vlog2.pop %v1569
        %v1573 = vmul.f32 %v1572, 0.6931472
        %v1574 = vadd.f32 %v1558, %v1571
        %v1575 = vadd.f32 %v1559, %v1573
        %vm1576 = vcmask 7168
        %1577 = vst.msk [vmem:[%s683] sm:$0xff] %vm1576, %v1538
        %vm1578 = vcmask 1024
        %1579 = vst.msk [vmem:[%s683 + $0x8] sm:$0x3] %vm1578, %v1539
        %1580 = vst.msk [vmem:[%s688] sm:$0xff] %vm1576, %v1574
        %1581 = vst.msk [vmem:[%s688 + $0x8] sm:$0x3] %vm1578, %v1575
        %p1582 = scmp.lt.s32.totalorder %s35, 1
        %s1583 = scalar_select %p1582, %s35, 1
        %s1584 = smul.addr %s1583, 2
        %s1585 = smul.addr %s1584, 8
        %s1586 = scalar_lea.vmem %s17, %s1585
        %p1587 = scmp.lt.s32.totalorder %s35, 1
        %s1588 = scalar_select %p1587, %s35, 1
        %s1589 = smul.addr %s1588, 2
        %s1590 = smul.addr %s1589, 8
        %s1591 = scalar_lea.vmem %s18, %s1590
        // Predicated region
        $region109: #{tpu_custom_call.1} parent=87 // pred_check
          %p1592 = pneg %p425
        $region110: #{tpu_custom_call.1} parent=87 // pred_check_branch
          %1594 = sbr.rel (%p1592) target = $region112
        $region111: #{tpu_custom_call.1} parent=87 // pred_region
          _
        $region112: #{tpu_custom_call.1} parent=87 // pred_fallthru
          _
        // Predicated region
        $region113: #{tpu_custom_call.1} parent=87 // pred_check
          %p1595 = pneg %p451
        $region114: #{tpu_custom_call.1} parent=87 // pred_check_branch
          %1597 = sbr.rel (%p1595) target = $region116
        $region115: #{tpu_custom_call.1} parent=87 // pred_region
          _
        $region116: #{tpu_custom_call.1} parent=87 // pred_fallthru
          _
      $region88: #{tpu_custom_call.1} parent=5 // pred_fallthru
        _
      %p1598 = scmp.le.s32.totalorder 2, %s30
      // Predicated region
      $region117: #{tpu_custom_call.1} parent=5 // pred_check
        %p1599 = pneg %p1598
      $region118: #{tpu_custom_call.1} parent=5 // pred_check_branch
        %1601 = sbr.rel (%p1599) target = $region120
      $region119: #{tpu_custom_call.1} parent=5 // pred_region
        %s1602 = ssub.s32 %s30, 2
        // Predicated region
        $region121: #{tpu_custom_call.1} parent=119 // pred_check
          %p1603 = pneg %p431
        $region122: #{tpu_custom_call.1} parent=119 // pred_check_branch
          %1605 = sbr.rel (%p1603) target = $region124
        $region123: #{tpu_custom_call.1} parent=119 // pred_region
          %p1606 = scmp.lt.s32.totalorder %s36, 1
          %s1607 = scalar_select %p1606, %s36, 1
          %s1608 = smul.addr %s1607, 2
          %s1609 = smul.addr %s1608, 8
          %s1610 = scalar_lea.vmem %s17, %s1609
        $region124: #{tpu_custom_call.1} parent=119 // pred_fallthru
          _
        // Predicated region
        $region125: #{tpu_custom_call.1} parent=119 // pred_check
          %p1611 = pneg %p457
        $region126: #{tpu_custom_call.1} parent=119 // pred_check_branch
          %1613 = sbr.rel (%p1611) target = $region128
        $region127: #{tpu_custom_call.1} parent=119 // pred_region
          %p1614 = scmp.lt.s32.totalorder %s36, 1
          %s1615 = scalar_select %p1614, %s36, 1
          %s1616 = smul.addr %s1615, 2
          %s1617 = smul.addr %s1616, 8
          %s1618 = scalar_lea.vmem %s18, %s1617
        $region128: #{tpu_custom_call.1} parent=119 // pred_fallthru
          _
      $region120: #{tpu_custom_call.1} parent=5 // pred_fallthru
        _
    $region6: #{tpu_custom_call.1} parent=1 // loop_footer
      %s34 = sadd.s32 1, %s30
    $region7: #{tpu_custom_call.1} parent=1 // loop_footer_branch
      %29 = sbr.rel target = $region3
    $region8: #{tpu_custom_call.1} parent=1 // loop_exit
      _
    %1619 = vsyncpa [#allocation7], 1
    %s1620 = scalar_lea.sflag [#allocation7], 1
    %1621 = vsyncpa %s1620, 1
    %1622 = vsyncpa [#allocation9], 1
    %1623 = vsyncpa [#allocation12], 1

</llo_original>
